<compile_context>
chip_gen: v7x
topology: tpu7x:2x2x1
jax: 0.10.0
libtpu: 0.0.40
codegen_flags: <defaults>
</compile_context>

<pallas_src>
import functools

import jax
import jax.numpy as jnp
from jax import lax
from jax.experimental import pallas as pl
from jax.experimental.pallas import tpu as pltpu


def _round_up(x, m):
    return ((x + m - 1) // m) * m


def _softplus(x):
    # torch.nn.Softplus(beta=1, threshold=20)
    return jnp.where(x > 20.0, x, jnp.log1p(jnp.exp(jnp.minimum(x, 20.0))))


def _extra_embedding_kernel(
    extra_ref,   # [TB, 2]   raw (pressure, co2frac) tile
    stats_ref,   # [1, 128]  full-batch input stats: mx0, mx1, var0, var1, cov
    vec_ref,     # [8, Hp]   f32 row-vector params (W1 rows, biases, BN affine)
    wslab_ref,   # [3*Hp + nbins_pad, Hp]  weight slab (f32 or bf16)
    out_ref,     # [TB, Hp]
    *, bins, nbins_pad, hp, pmin, pmax, cmin, cmax,
):
    x = extra_ref[...].astype(jnp.float32)          # [TB, 2]
    tb = x.shape[0]
    x0 = x[:, 0:1]                                  # pressure  [TB, 1]
    x1 = x[:, 1:2]                                  # co2frac   [TB, 1]
    wdt = wslab_ref.dtype                           # MXU operand dtype

    # ---- packed row-vector params: one (8, Hp) f32 tile ----
    vec = vec_ref[...]
    w1r0, w1r1 = vec[0:1, :], vec[1:2, :]           # project1.linear1 weight rows
    b1 = vec[2:3, :]
    gamma, beta = vec[3:4, :], vec[4:5, :]
    p1b2 = vec[5:6, :]
    p2b1 = vec[6:7, :]
    p2b2 = vec[7:8, :]

    # ---- BatchNorm1d (training-mode batch stats) folded analytically ----
    # mean(h) = mx0*w0 + mx1*w1 + b ; var(h) = var0*w0^2 + var1*w1^2 + 2*cov*w0*w1
    # (exact by linearity; stats are over the *full* batch, so batch tiles stay
    #  independent and the grid axis can be "parallel")
    st = stats_ref[...]                             # [1, 128]
    mx0, mx1 = st[:, 0:1], st[:, 1:2]
    v0, v1, cv = st[:, 2:3], st[:, 3:4], st[:, 4:5]
    mean_h = mx0 * w1r0 + mx1 * w1r1 + b1                                   # [1, Hp]
    var_h = v0 * (w1r0 * w1r0) + v1 * (w1r1 * w1r1) + 2.0 * cv * (w1r0 * w1r1)
    scale = gamma * lax.rsqrt(var_h + 1e-5)                                 # [1, Hp]
    shift = beta - mean_h * scale

    # ---- binning -> single combined one-hot (one iota, clamped bins) ----
    p = jnp.clip(x0, pmin, pmax)
    p = (p - pmin) * (1.0 / (pmax - pmin))
    p_bin = jnp.minimum(jnp.floor(p * bins).astype(jnp.int32), bins - 1)        # [TB,1]

    c = jnp.clip(x1, cmin, cmax)
    c = (c - cmin) * (1.0 / (cmax - cmin))
    c_bin = jnp.minimum(jnp.floor(c * bins).astype(jnp.int32), bins - 1) + bins  # [TB,1]

    iota = lax.broadcasted_iota(jnp.int32, (tb, nbins_pad), 1)
    onehot = ((iota == p_bin) | (iota == c_bin)).astype(jnp.float32)            # [TB, nbins_pad]

    # ---- project1: Linear(2->H) on the VPU -> BatchNorm1d -> Softplus -> Linear(H->H)
    h = (x0 * w1r0 + x1 * w1r1 + b1) * scale + shift                            # f32 VPU FMAs
    h = _softplus(h)

    p1w2 = wslab_ref[0:hp, :]
    env = jnp.dot(h.astype(wdt), p1w2, preferred_element_type=jnp.float32) + p1b2

    # ---- project2 on concat([env, press_emb, co2_emb]) ----
    # embedding tables are pre-folded into project2.linear1 rows, and p2_w1_env
    # is contiguous with them in the slab -> ONE fused K=(Hp+nbins_pad) matmul.
    cat = jnp.concatenate([env, onehot], axis=1).astype(wdt)                    # [TB, Hp+nbins_pad]
    p2w1 = wslab_ref[hp:2 * hp + nbins_pad, :]
    g = jnp.dot(cat, p2w1, preferred_element_type=jnp.float32) + p2b1
    g = _softplus(g)

    p2w2 = wslab_ref[2 * hp + nbins_pad:3 * hp + nbins_pad, :]
    out_ref[...] = (
        jnp.dot(g.astype(wdt), p2w2, preferred_element_type=jnp.float32) + p2b2
    ).astype(out_ref.dtype)


def pack_params(params, *, bins, param_dtype=jnp.bfloat16):
    """Fold embedding tables into project2.linear1 and pack parameters into
    (a) an f32 [8, Hp] row-vector slab and (b) a `param_dtype` weight slab
    [3*Hp + nbins_pad, Hp].  Weights are assumed fixed for inference."""
    H = params["p1_w2"].shape[1]
    Hp = _round_up(H, 128)
    nbins = 2 * bins
    nbins_pad = _round_up(nbins, 128)      # lane-dense one-hot K dimension

    def pad_h(a):  # pad last dim H -> Hp with zeros
        return jnp.pad(a, [(0, 0)] * (a.ndim - 1) + [(0, Hp - H)])

    def pad_sq(w):  # [H, H] -> [Hp, Hp] zero padded
        return jnp.pad(w, ((0, Hp - H), (0, Hp - H)))

    # embedding tables folded into project2.linear1's press/co2 slices (f32 math)
    press_fused = params["press_tab"] @ params["p2_w1_press"]   # [bins, H]
    co2_fused = params["co2_tab"] @ params["p2_w1_co2"]         # [bins, H]
    emb = jnp.concatenate([press_fused, co2_fused], axis=0)     # [2*bins, H]
    emb = jnp.pad(emb, ((0, nbins_pad - nbins), (0, Hp - H)))

    # 8 rows of per-lane vectors (exactly one (8, Hp) tile), kept f32
    vec = jnp.concatenate(
        [
            params["p1_w1"],      # rows 0-1
            params["p1_b1"],      # row 2
            params["bn_gamma"],   # row 3
            params["bn_beta"],    # row 4
            params["p1_b2"],      # row 5
            params["p2_b1"],      # row 6
            params["p2_b2"],      # row 7
        ],
        axis=0,
    )
    vec = pad_h(vec).astype(jnp.float32)

    wslab = jnp.concatenate(
        [
            pad_sq(params["p1_w2"]),      # rows [0, Hp)
            pad_sq(params["p2_w1_env"]),  # rows [Hp, 2Hp)
            emb,                          # rows [2Hp, 2Hp+nbins_pad)
            pad_sq(params["p2_w2"]),      # rows [2Hp+nbins_pad, 3Hp+nbins_pad)
        ],
        axis=0,
    ).astype(param_dtype)
    return vec, wslab


def extra_embedding_forward(extra_fea, vec, wslab, *, bins, hidden_dim,
                            min_max_key, batch_block=128):
    B = extra_fea.shape[0]
    H = hidden_dim
    Hp = _round_up(H, 128)
    nbins_pad = _round_up(2 * bins, 128)
    assert vec.shape == (8, Hp)
    assert wslab.shape == (3 * Hp + nbins_pad, Hp)

    pmin, pmax = (float(v) for v in min_max_key["pressure"])
    cmin, cmax = (float(v) for v in min_max_key["co2frac"])
    assert pmax > pmin and cmax > cmin, "degenerate min_max_key range"

    # Full-batch BN statistics of the 2 raw features (mean / centered var / cov)
    # computed once here so batch tiles inside the kernel stay independent.
    xf = extra_fea.astype(jnp.float32)
    xm = jnp.mean(xf, axis=0)                       # [2]
    xc = xf - xm
    xv = jnp.mean(xc * xc, axis=0)                  # [2] biased variance
    xcov = jnp.mean(xc[:, 0] * xc[:, 1])
    stats = jnp.zeros((1, 128), jnp.float32)
    stats = stats.at[0, 0].set(xm[0]).at[0, 1].set(xm[1])
    stats = stats.at[0, 2].set(xv[0]).at[0, 3].set(xv[1]).at[0, 4].set(xcov)

    # batch tiling (pad B to a multiple of the tile)
    TB = _round_up(min(batch_block, _round_up(max(B, 8), 8)), 8)
    Bp = _round_up(B, TB)
    if Bp != B:
        xpad = jnp.zeros((Bp - B, 2), extra_fea.dtype) + jnp.array(
            [pmin, cmin], extra_fea.dtype)          # in-range padding rows
        extra_p = jnp.concatenate([extra_fea, xpad], axis=0)
    else:
        extra_p = extra_fea
    nb = Bp // TB

    kernel = functools.partial(
        _extra_embedding_kernel,
        bins=bins, nbins_pad=nbins_pad, hp=Hp,
        pmin=pmin, pmax=pmax, cmin=cmin, cmax=cmax,
    )

    cost = pl.CostEstimate(
        flops=int(2 * Bp * Hp * (2 * Hp + nbins_pad) + 2 * Bp * Hp * Hp + 32 * Bp * Hp),
        transcendentals=int(4 * Bp * Hp),
        bytes_accessed=int(
            vec.size * 4
            + wslab.size * wslab.dtype.itemsize
            + extra_p.size * 4
            + Bp * Hp * 4
        ),
    )

    out = pl.pallas_call(
        kernel,
        out_shape=jax.ShapeDtypeStruct((Bp, Hp), jnp.float32),
        grid=(nb,),
        in_specs=[
            pl.BlockSpec((TB, 2), lambda b: (b, 0)),                     # extra tile
            pl.BlockSpec((1, 128), lambda b: (0, 0)),                    # batch stats
            pl.BlockSpec((8, Hp), lambda b: (0, 0)),                     # f32 vec slab
            pl.BlockSpec((3 * Hp + nbins_pad, Hp), lambda b: (0, 0)),    # weight slab
        ],
        out_specs=pl.BlockSpec((TB, Hp), lambda b: (b, 0)),
        compiler_params=pltpu.CompilerParams(
            dimension_semantics=("parallel",),       # shard batch tiles across TCs
        ),
        cost_estimate=cost,
    )(extra_p, stats, vec, wslab)
    return out[:B, :H]


def _reference_forward(extra_fea, params, *, bins, min_max_key):
    """Plain-JAX reference (module semantics) for verification."""
    x = extra_fea.astype(jnp.float32)
    pmin, pmax = min_max_key["pressure"]
    cmin, cmax = min_max_key["co2frac"]

    p = jnp.clip(x[:, 0], pmin, pmax)
    p = (p - pmin) / (pmax - pmin)
    p_bin = jnp.minimum(jnp.floor(p * bins).astype(jnp.int32), bins - 1)
    press_emb = params["press_tab"][p_bin]

    c = jnp.clip(x[:, 1], cmin, cmax)
    c = (c - cmin) / (cmax - cmin)
    c_bin = jnp.minimum(jnp.floor(c * bins).astype(jnp.int32), bins - 1)
    co2_emb = params["co2_tab"][c_bin]

    h = x @ params["p1_w1"] + params["p1_b1"]
    mean = jnp.mean(h, axis=0, keepdims=True)
    var = jnp.mean((h - mean) ** 2, axis=0, keepdims=True)
    h = (h - mean) / jnp.sqrt(var + 1e-5) * params["bn_gamma"] + params["bn_beta"]
    h = jnp.where(h > 20.0, h, jnp.log1p(jnp.exp(jnp.minimum(h, 20.0))))
    env_project = h @ params["p1_w2"] + params["p1_b2"]

    env_repr = jnp.concatenate([env_project, press_emb, co2_emb], axis=-1)
    w1 = jnp.concatenate(
        [params["p2_w1_env"], params["p2_w1_press"], params["p2_w1_co2"]], axis=0
    )
    g = env_repr @ w1 + params["p2_b1"]
    g = jnp.where(g > 20.0, g, jnp.log1p(jnp.exp(jnp.minimum(g, 20.0))))
    return g @ params["p2_w2"] + params["p2_b2"]


def init_params(key, hidden_dim, bins, orig_extra_dim=2):
    assert hidden_dim % 2 == 0
    H, half = hidden_dim, hidden_dim // 2
    ks = jax.random.split(key, 10)
    scale = 0.1
    return {
        # project1: NonLinearHead(2, H, hidden=H, norm='batch')
        "p1_w1": scale * jax.random.normal(ks[0], (orig_extra_dim, H), jnp.float32),
        "p1_b1": scale * jax.random.normal(ks[1], (1, H), jnp.float32),
        "bn_gamma": jnp.ones((1, H), jnp.float32),
        "bn_beta": jnp.zeros((1, H), jnp.float32),
        "p1_w2": scale * jax.random.normal(ks[2], (H, H), jnp.float32),
        "p1_b2": scale * jax.random.normal(ks[3], (1, H), jnp.float32),
        # embedding tables
        "press_tab": scale * jax.random.normal(ks[4], (bins, half), jnp.float32),
        "co2_tab": scale * jax.random.normal(ks[5], (bins, half), jnp.float32),
        # project2: NonLinearHead(2H, H) — linear1 weight split along input dim
        "p2_w1_env": scale * jax.random.normal(ks[6], (H, H), jnp.float32),
        "p2_w1_press": scale * jax.random.normal(ks[7], (half, H), jnp.float32),
        "p2_w1_co2": scale * jax.random.normal(ks[8], (half, H), jnp.float32),
        "p2_b1": scale * jax.random.normal(ks[9], (1, H), jnp.float32),
        "p2_w2": scale * jax.random.normal(jax.random.fold_in(key, 100), (H, H), jnp.float32),
        "p2_b2": scale * jax.random.normal(jax.random.fold_in(key, 101), (1, H), jnp.float32),
    }


if __name__ == "__main__":
    B, H, BINS = 200, 32, 32       # non-multiple of the 128-row tile -> exercises padding + 2-tile grid
    min_max_key = {"pressure": (0.0, 10.0), "co2frac": (0.0, 1.0)}

    key = jax.random.PRNGKey(0)
    k_x, k_p = jax.random.split(key)
    params = init_params(k_p, H, BINS)

    # extra_fea: [B, 2] = (pressure, co2frac) raw values
    pressure = jax.random.uniform(jax.random.fold_in(k_x, 0), (B,), minval=0.0, maxval=9.5)
    co2frac = jax.random.uniform(jax.random.fold_in(k_x, 1), (B,), minval=0.0, maxval=0.95)
    extra_fea = jnp.stack([pressure, co2frac], axis=-1).astype(jnp.float32)
    # exercise the clip/bin boundary (input exactly at the max of the range)
    extra_fea = extra_fea.at[-1].set(jnp.array([10.0, 1.0], jnp.float32))

    ref = _reference_forward(extra_fea, params, bins=BINS, min_max_key=min_max_key)

    # --- f32 weight slab: exact path (tight tolerance) ---
    vec32, wslab32 = pack_params(params, bins=BINS, param_dtype=jnp.float32)
    out32 = extra_embedding_forward(
        extra_fea, vec32, wslab32, bins=BINS, hidden_dim=H, min_max_key=min_max_key
    )
    out32 = jax.block_until_ready(out32)
    assert out32.shape == (B, H)
    assert jnp.allclose(out32, ref, atol=1e-4, rtol=1e-4), "f32 path mismatch vs reference"

    # --- bf16 weight slab: fast MXU / half-size DMA path (looser tolerance) ---
    vec16, wslab16 = pack_params(params, bins=BINS, param_dtype=jnp.bfloat16)
    out16 = extra_embedding_forward(
        extra_fea, vec16, wslab16, bins=BINS, hidden_dim=H, min_max_key=min_max_key
    )
    out16 = jax.block_until_ready(out16)
    assert out16.shape == (B, H)
    assert jnp.allclose(out16, ref, atol=3e-2, rtol=3e-2), "bf16 path mismatch vs reference"

    print("KERNEL_OK")
</pallas_src>

<mosaic_0001>
module attributes {stable_mosaic.version = 11 : i64} {
  func.func @_extra_embedding_kernel(%arg0: i32, %arg1: memref<128x2xf32, #tpu.memory_space<vmem>>, %arg2: memref<1x128xf32, #tpu.memory_space<vmem>>, %arg3: memref<8x128xf32, #tpu.memory_space<vmem>>, %arg4: memref<512x128xf32, #tpu.memory_space<vmem>>, %arg5: memref<128x128xf32, #tpu.memory_space<vmem>>) attributes {dimension_semantics = [#tpu.dimension_semantics<parallel>], iteration_bounds = array<i64: 2>, scalar_prefetch = 0 : i64, scratch_operands = 0 : i64, tpu.core_type = #tpu.core_type<tc>, window_params = [{transform_indices = @transform_0, window_bounds = array<i64: 128, 2>}, {pipeline_mode = #tpu.pipeline_mode<synchronous>, transform_indices = @transform_1, window_bounds = array<i64: 1, 128>}, {pipeline_mode = #tpu.pipeline_mode<synchronous>, transform_indices = @transform_2, window_bounds = array<i64: 8, 128>}, {pipeline_mode = #tpu.pipeline_mode<synchronous>, transform_indices = @transform_3, window_bounds = array<i64: 512, 128>}, {transform_indices = @transform_4, window_bounds = array<i64: 128, 128>}]} {
    %c0 = arith.constant 0 : index
    %c0_0 = arith.constant 0 : index
    %0 = vector.load %arg1[%c0, %c0_0] : memref<128x2xf32, #tpu.memory_space<vmem>>, vector<128x2xf32>
    %1 = vector.extract_strided_slice %0 {offsets = [0, 0], sizes = [128, 1], strides = [1, 1]} : vector<128x2xf32> to vector<128x1xf32>
    %2 = vector.extract_strided_slice %0 {offsets = [0, 1], sizes = [128, 1], strides = [1, 1]} : vector<128x2xf32> to vector<128x1xf32>
    %c0_1 = arith.constant 0 : index
    %c0_2 = arith.constant 0 : index
    %3 = vector.load %arg3[%c0_1, %c0_2] : memref<8x128xf32, #tpu.memory_space<vmem>>, vector<8x128xf32>
    %4 = vector.extract_strided_slice %3 {offsets = [0, 0], sizes = [1, 128], strides = [1, 1]} : vector<8x128xf32> to vector<1x128xf32>
    %5 = vector.extract_strided_slice %3 {offsets = [1, 0], sizes = [1, 128], strides = [1, 1]} : vector<8x128xf32> to vector<1x128xf32>
    %6 = vector.extract_strided_slice %3 {offsets = [2, 0], sizes = [1, 128], strides = [1, 1]} : vector<8x128xf32> to vector<1x128xf32>
    %7 = vector.extract_strided_slice %3 {offsets = [3, 0], sizes = [1, 128], strides = [1, 1]} : vector<8x128xf32> to vector<1x128xf32>
    %8 = vector.extract_strided_slice %3 {offsets = [4, 0], sizes = [1, 128], strides = [1, 1]} : vector<8x128xf32> to vector<1x128xf32>
    %9 = vector.extract_strided_slice %3 {offsets = [5, 0], sizes = [1, 128], strides = [1, 1]} : vector<8x128xf32> to vector<1x128xf32>
    %10 = vector.extract_strided_slice %3 {offsets = [6, 0], sizes = [1, 128], strides = [1, 1]} : vector<8x128xf32> to vector<1x128xf32>
    %11 = vector.extract_strided_slice %3 {offsets = [7, 0], sizes = [1, 128], strides = [1, 1]} : vector<8x128xf32> to vector<1x128xf32>
    %c0_3 = arith.constant 0 : index
    %c0_4 = arith.constant 0 : index
    %12 = vector.load %arg2[%c0_3, %c0_4] : memref<1x128xf32, #tpu.memory_space<vmem>>, vector<1x128xf32>
    %13 = vector.extract_strided_slice %12 {offsets = [0, 0], sizes = [1, 1], strides = [1, 1]} : vector<1x128xf32> to vector<1x1xf32>
    %14 = vector.extract_strided_slice %12 {offsets = [0, 1], sizes = [1, 1], strides = [1, 1]} : vector<1x128xf32> to vector<1x1xf32>
    %15 = vector.extract_strided_slice %12 {offsets = [0, 2], sizes = [1, 1], strides = [1, 1]} : vector<1x128xf32> to vector<1x1xf32>
    %16 = vector.extract_strided_slice %12 {offsets = [0, 3], sizes = [1, 1], strides = [1, 1]} : vector<1x128xf32> to vector<1x1xf32>
    %17 = vector.extract_strided_slice %12 {offsets = [0, 4], sizes = [1, 1], strides = [1, 1]} : vector<1x128xf32> to vector<1x1xf32>
    %18 = vector.broadcast %13 : vector<1x1xf32> to vector<1x128xf32>
    %19 = arith.mulf %18, %4 : vector<1x128xf32>
    %20 = vector.broadcast %14 : vector<1x1xf32> to vector<1x128xf32>
    %21 = arith.mulf %20, %5 : vector<1x128xf32>
    %22 = arith.addf %19, %21 : vector<1x128xf32>
    %23 = arith.addf %22, %6 : vector<1x128xf32>
    %24 = arith.mulf %4, %4 : vector<1x128xf32>
    %25 = vector.broadcast %15 : vector<1x1xf32> to vector<1x128xf32>
    %26 = arith.mulf %25, %24 : vector<1x128xf32>
    %27 = arith.mulf %5, %5 : vector<1x128xf32>
    %28 = vector.broadcast %16 : vector<1x1xf32> to vector<1x128xf32>
    %29 = arith.mulf %28, %27 : vector<1x128xf32>
    %30 = arith.addf %26, %29 : vector<1x128xf32>
    %cst = arith.constant 2.000000e+00 : f32
    %31 = vector.broadcast %cst : f32 to vector<1x1xf32>
    %32 = arith.mulf %31, %17 : vector<1x1xf32>
    %33 = arith.mulf %4, %5 : vector<1x128xf32>
    %34 = vector.broadcast %32 : vector<1x1xf32> to vector<1x128xf32>
    %35 = arith.mulf %34, %33 : vector<1x128xf32>
    %36 = arith.addf %30, %35 : vector<1x128xf32>
    %cst_5 = arith.constant 9.99999974E-6 : f32
    %37 = vector.broadcast %cst_5 : f32 to vector<1x128xf32>
    %38 = arith.addf %36, %37 : vector<1x128xf32>
    %39 = math.rsqrt %38 : vector<1x128xf32>
    %40 = arith.mulf %7, %39 : vector<1x128xf32>
    %41 = arith.mulf %23, %40 : vector<1x128xf32>
    %42 = arith.subf %8, %41 : vector<1x128xf32>
    %cst_6 = arith.constant 0.000000e+00 : f32
    %cst_7 = arith.constant 1.000000e+01 : f32
    %43 = vector.broadcast %cst_6 : f32 to vector<128x1xf32>
    %44 = arith.maximumf %43, %1 : vector<128x1xf32>
    %45 = vector.broadcast %cst_7 : f32 to vector<128x1xf32>
    %46 = arith.minimumf %45, %44 : vector<128x1xf32>
    %cst_8 = arith.constant 0.000000e+00 : f32
    %47 = vector.broadcast %cst_8 : f32 to vector<128x1xf32>
    %48 = arith.subf %46, %47 : vector<128x1xf32>
    %cst_9 = arith.constant 1.000000e-01 : f32
    %49 = vector.broadcast %cst_9 : f32 to vector<128x1xf32>
    %50 = arith.mulf %48, %49 : vector<128x1xf32>
    %cst_10 = arith.constant 3.200000e+01 : f32
    %51 = vector.broadcast %cst_10 : f32 to vector<128x1xf32>
    %52 = arith.mulf %50, %51 : vector<128x1xf32>
    %53 = math.floor %52 : vector<128x1xf32>
    %54 = arith.fptosi %53 : vector<128x1xf32> to vector<128x1xi32>
    %c31_i32 = arith.constant 31 : i32
    %55 = vector.broadcast %c31_i32 : i32 to vector<128x1xi32>
    %56 = arith.minsi %54, %55 : vector<128x1xi32>
    %cst_11 = arith.constant 0.000000e+00 : f32
    %cst_12 = arith.constant 1.000000e+00 : f32
    %57 = vector.broadcast %cst_11 : f32 to vector<128x1xf32>
    %58 = arith.maximumf %57, %2 : vector<128x1xf32>
    %59 = vector.broadcast %cst_12 : f32 to vector<128x1xf32>
    %60 = arith.minimumf %59, %58 : vector<128x1xf32>
    %cst_13 = arith.constant 0.000000e+00 : f32
    %61 = vector.broadcast %cst_13 : f32 to vector<128x1xf32>
    %62 = arith.subf %60, %61 : vector<128x1xf32>
    %cst_14 = arith.constant 1.000000e+00 : f32
    %63 = vector.broadcast %cst_14 : f32 to vector<128x1xf32>
    %64 = arith.mulf %62, %63 : vector<128x1xf32>
    %cst_15 = arith.constant 3.200000e+01 : f32
    %65 = vector.broadcast %cst_15 : f32 to vector<128x1xf32>
    %66 = arith.mulf %64, %65 : vector<128x1xf32>
    %67 = math.floor %66 : vector<128x1xf32>
    %68 = arith.fptosi %67 : vector<128x1xf32> to vector<128x1xi32>
    %c31_i32_16 = arith.constant 31 : i32
    %69 = vector.broadcast %c31_i32_16 : i32 to vector<128x1xi32>
    %70 = arith.minsi %68, %69 : vector<128x1xi32>
    %c32_i32 = arith.constant 32 : i32
    %71 = vector.broadcast %c32_i32 : i32 to vector<128x1xi32>
    %72 = arith.addi %70, %71 : vector<128x1xi32>
    %73 = tpu.iota {dimensions = array<i32: 1>} : vector<128x128xi32>
    %74 = vector.broadcast %56 : vector<128x1xi32> to vector<128x128xi32>
    %75 = arith.cmpi eq, %73, %74 : vector<128x128xi32>
    %76 = vector.broadcast %72 : vector<128x1xi32> to vector<128x128xi32>
    %77 = arith.cmpi eq, %73, %76 : vector<128x128xi32>
    %78 = arith.ori %75, %77 : vector<128x128xi1>
    %79 = arith.extui %78 : vector<128x128xi1> to vector<128x128xi32>
    %80 = arith.sitofp %79 : vector<128x128xi32> to vector<128x128xf32>
    %81 = vector.broadcast %1 : vector<128x1xf32> to vector<128x128xf32>
    %82 = vector.broadcast %4 : vector<1x128xf32> to vector<128x128xf32>
    %83 = arith.mulf %81, %82 : vector<128x128xf32>
    %84 = vector.broadcast %2 : vector<128x1xf32> to vector<128x128xf32>
    %85 = vector.broadcast %5 : vector<1x128xf32> to vector<128x128xf32>
    %86 = arith.mulf %84, %85 : vector<128x128xf32>
    %87 = arith.addf %83, %86 : vector<128x128xf32>
    %88 = vector.broadcast %6 : vector<1x128xf32> to vector<128x128xf32>
    %89 = arith.addf %87, %88 : vector<128x128xf32>
    %90 = vector.broadcast %40 : vector<1x128xf32> to vector<128x128xf32>
    %91 = arith.mulf %89, %90 : vector<128x128xf32>
    %92 = vector.broadcast %42 : vector<1x128xf32> to vector<128x128xf32>
    %93 = arith.addf %91, %92 : vector<128x128xf32>
    %cst_17 = arith.constant 2.000000e+01 : f32
    %94 = vector.broadcast %cst_17 : f32 to vector<128x128xf32>
    %95 = arith.cmpf ogt, %93, %94 : vector<128x128xf32>
    %cst_18 = arith.constant 2.000000e+01 : f32
    %96 = vector.broadcast %cst_18 : f32 to vector<128x128xf32>
    %97 = arith.minimumf %93, %96 : vector<128x128xf32>
    %98 = math.exp %97 : vector<128x128xf32>
    %99 = math.log1p %98 : vector<128x128xf32>
    %100 = arith.select %95, %93, %99 : vector<128x128xi1>, vector<128x128xf32>
    %c0_19 = arith.constant 0 : index
    %c0_20 = arith.constant 0 : index
    %101 = vector.load %arg4[%c0_19, %c0_20] : memref<512x128xf32, #tpu.memory_space<vmem>>, vector<128x128xf32>
    %cst_21 = arith.constant dense<0.000000e+00> : vector<128x128xf32>
    %102 = tpu.matmul %100, %101, %cst_21 {dimension_numbers = #tpu.dot_dimension_numbers<[1], [0], [0], [1], [0, 0, 1, 1], [], []>} : vector<128x128xf32>, vector<128x128xf32>, vector<128x128xf32> -> vector<128x128xf32>
    %103 = vector.broadcast %9 : vector<1x128xf32> to vector<128x128xf32>
    %104 = arith.addf %102, %103 : vector<128x128xf32>
    %105 = tpu.concatenate %104, %80 in 1 : vector<128x128xf32>, vector<128x128xf32> -> vector<128x256xf32>
    %c128 = arith.constant 128 : index
    %c0_22 = arith.constant 0 : index
    %106 = vector.load %arg4[%c128, %c0_22] : memref<512x128xf32, #tpu.memory_space<vmem>>, vector<256x128xf32>
    %cst_23 = arith.constant dense<0.000000e+00> : vector<128x128xf32>
    %107 = tpu.matmul %105, %106, %cst_23 {dimension_numbers = #tpu.dot_dimension_numbers<[1], [0], [0], [1], [0, 0, 1, 1], [], []>} : vector<128x256xf32>, vector<256x128xf32>, vector<128x128xf32> -> vector<128x128xf32>
    %108 = vector.broadcast %10 : vector<1x128xf32> to vector<128x128xf32>
    %109 = arith.addf %107, %108 : vector<128x128xf32>
    %cst_24 = arith.constant 2.000000e+01 : f32
    %110 = vector.broadcast %cst_24 : f32 to vector<128x128xf32>
    %111 = arith.cmpf ogt, %109, %110 : vector<128x128xf32>
    %cst_25 = arith.constant 2.000000e+01 : f32
    %112 = vector.broadcast %cst_25 : f32 to vector<128x128xf32>
    %113 = arith.minimumf %109, %112 : vector<128x128xf32>
    %114 = math.exp %113 : vector<128x128xf32>
    %115 = math.log1p %114 : vector<128x128xf32>
    %116 = arith.select %111, %109, %115 : vector<128x128xi1>, vector<128x128xf32>
    %c384 = arith.constant 384 : index
    %c0_26 = arith.constant 0 : index
    %117 = vector.load %arg4[%c384, %c0_26] : memref<512x128xf32, #tpu.memory_space<vmem>>, vector<128x128xf32>
    %cst_27 = arith.constant dense<0.000000e+00> : vector<128x128xf32>
    %118 = tpu.matmul %116, %117, %cst_27 {dimension_numbers = #tpu.dot_dimension_numbers<[1], [0], [0], [1], [0, 0, 1, 1], [], []>} : vector<128x128xf32>, vector<128x128xf32>, vector<128x128xf32> -> vector<128x128xf32>
    %119 = vector.broadcast %11 : vector<1x128xf32> to vector<128x128xf32>
    %120 = arith.addf %118, %119 : vector<128x128xf32>
    %c0_28 = arith.constant 0 : index
    %c0_29 = arith.constant 0 : index
    %121 = vector.load %arg5[%c0_28, %c0_29] : memref<128x128xf32, #tpu.memory_space<vmem>>, vector<128x128xf32>
    tpu.vector_store %arg5[%c0_28, %c0_29], %120 {strides = array<i32>} : memref<128x128xf32, #tpu.memory_space<vmem>>, vector<128x128xf32>,
    return
  }
  func.func @transform_0(%arg0: i32) -> (i32, i32) {
    %c0_i32 = arith.constant 0 : i32
    %c0_i32_0 = arith.constant 0 : i32
    return %arg0, %c0_i32 : i32, i32
  }
  func.func @transform_1(%arg0: i32) -> (i32, i32) {
    %c0_i32 = arith.constant 0 : i32
    %c0_i32_0 = arith.constant 0 : i32
    %c0_i32_1 = arith.constant 0 : i32
    return %c0_i32, %c0_i32_0 : i32, i32
  }
  func.func @transform_2(%arg0: i32) -> (i32, i32) {
    %c0_i32 = arith.constant 0 : i32
    %c0_i32_0 = arith.constant 0 : i32
    %c0_i32_1 = arith.constant 0 : i32
    return %c0_i32, %c0_i32_0 : i32, i32
  }
  func.func @transform_3(%arg0: i32) -> (i32, i32) {
    %c0_i32 = arith.constant 0 : i32
    %c0_i32_0 = arith.constant 0 : i32
    %c0_i32_1 = arith.constant 0 : i32
    return %c0_i32, %c0_i32_0 : i32, i32
  }
  func.func @transform_4(%arg0: i32) -> (i32, i32) {
    %c0_i32 = arith.constant 0 : i32
    %c0_i32_0 = arith.constant 0 : i32
    return %arg0, %c0_i32 : i32, i32
  }
}

</mosaic_0001>

<llo_original>
// kernel: tpu_custom_call.1
$region0: #{tpu_custom_call.1}
  #allocation0 [shape = 'u32[]', space=smem, size = 0x4, offset = 0x4, fixed_abs, tag = 'smem constant byte address 0x4 - core index']
  #allocation1 [shape = 'u32[144,128]{1,0:T(1,128)}', space=vmem, size = 0x12000, scoped, tag = 'internal scratch']
  %s0 = inlined_call_operand.vmem [shape: f32[256,2], index: 0, kind: input, shape index: {}]
  %s1 = inlined_call_operand.vmem [shape: f32[1,128], index: 1, kind: input, shape index: {}]
  %s2 = inlined_call_operand.vmem [shape: f32[8,128], index: 2, kind: input, shape index: {}]
  %s3 = inlined_call_operand.hbm [shape: f32[512,128], index: 3, kind: input, shape index: {}]
  %s4 = inlined_call_operand.hbm [shape: f32[256,128], index: 4, kind: output, shape index: {}]
  %s5 = sld [smem:[#allocation0]]
  $region53: #{tpu_custom_call.1} parent=0
    _
  %s7 = ssub.s32 1, %s5
  %s8 = scalar_select 0, %s7, %s5
  $region1: #{tpu_custom_call.1} parent=0
    #allocation2 [shape = 'u8[262144]{0}', space=vmem, size = 0x40000, scoped, tag = 'input window, operand 3, single buffered']
    #allocation3 [shape = 's32[2]{0}', space=sflag, size = 0x8, scoped, tag = 'scoped memory for tpu_custom_call.1']
    #allocation4 [shape = 's32[2]{0}', space=sflag, size = 0x8, scoped, tag = 'scoped memory for tpu_custom_call.1']
    #allocation5 [shape = 'u8[131072]{0}', space=vmem, size = 0x20000, scoped, tag = 'output window, operand 0']
    %9 = vsyncpa [#allocation3], 0
    %10 = vsyncpa [#allocation4], 0
    %s11 = scalar_lea.sflag [#allocation4], 1
    %12 = vsyncpa %s11, 0
    loop: start=0, step=1, limit=4
    $region2: #{tpu_custom_call.1} parent=1 // loop_pre_header
      _
    $region3: #{tpu_custom_call.1} parent=1 // loop_header
      %s14 = sphi 0, %s18
      %p15 = scmp.ge.s32.totalorder %s14, 4
      %s24 = sphi 0, %s26
      %s27 = sphi 0, %s24
      %s28 = sphi 0, %s27
      %s44 = sphi 0, %s28
      %s48 = sphi 0, %s48
      %s50 = sphi 0, %s48
      %s51 = sphi 0, %s50
      %s65 = sphi 0, %s51
      %s69 = sphi 0, %s69
      %s71 = sphi 0, %s69
      %s72 = sphi 0, %s71
      %s86 = sphi 0, %s72
      %s90 = sphi 0, %s90
      %s92 = sphi 0, %s90
      %s93 = sphi 0, %s92
      %s107 = sphi 0, %s93
      %s113 = sphi 0, %s115
      %s116 = sphi 0, %s113
      %s117 = sphi 0, %s116
      %s133 = sphi 0, %s117
    $region4: #{tpu_custom_call.1} parent=1 // loop_header_branch
      %17 = sbr.rel (%p15) target = $region8
    $region5: #{tpu_custom_call.1} parent=1 // loop_body
      %s19 = ssub.s32 %s14, 1
      %s20 = ssub.s32 %s14, 2
      %s21 = sadd.s32 %s14, 1
      %s22 = ssub.s32 %s14, %s21
      %p23 = scmp.eq.s32.totalorder %s22, 0
      %s25 = sadd.s32 %s24, 1
      %s26 = scalar_select %p23, %s24, %s25
      %p29 = pneg %p23
      %p30 = scmp.eq.s32.totalorder %s14, 1
      %p31 = por %p29, %p30
      %p32 = scmp.ne.s32.totalorder %s24, %s27
      %p33 = scmp.eq.s32.totalorder %s14, 0
      %p34 = por %p32, %p33
      %p35 = scmp.ne.s32.totalorder %s24, %s27
      %p36 = scmp.eq.s32.totalorder %s19, 1
      %p37 = por %p35, %p36
      %p38 = scmp.ne.s32.totalorder %s27, %s28
      %p39 = scmp.eq.s32.totalorder %s19, 0
      %p40 = por %p38, %p39
      %p41 = scmp.ne.s32.totalorder %s27, %s28
      %p42 = scmp.eq.s32.totalorder %s20, 1
      %p43 = por %p41, %p42
      %p45 = scmp.ne.s32.totalorder %s28, %s44
      %p46 = scmp.eq.s32.totalorder %s20, 0
      %p47 = por %p45, %p46
      %s49 = sadd.s32 %s48, 1
      %p52 = scmp.eq.s32.totalorder %s14, 1
      %p53 = scmp.ne.s32.totalorder %s48, %s50
      %p54 = scmp.eq.s32.totalorder %s14, 0
      %p55 = por %p53, %p54
      %p56 = scmp.ne.s32.totalorder %s48, %s50
      %p57 = scmp.eq.s32.totalorder %s19, 1
      %p58 = por %p56, %p57
      %p59 = scmp.ne.s32.totalorder %s50, %s51
      %p60 = scmp.eq.s32.totalorder %s19, 0
      %p61 = por %p59, %p60
      %p62 = scmp.ne.s32.totalorder %s50, %s51
      %p63 = scmp.eq.s32.totalorder %s20, 1
      %p64 = por %p62, %p63
      %p66 = scmp.ne.s32.totalorder %s51, %s65
      %p67 = scmp.eq.s32.totalorder %s20, 0
      %p68 = por %p66, %p67
      %s70 = sadd.s32 %s69, 1
      %p73 = scmp.eq.s32.totalorder %s14, 1
      %p74 = scmp.ne.s32.totalorder %s69, %s71
      %p75 = scmp.eq.s32.totalorder %s14, 0
      %p76 = por %p74, %p75
      %p77 = scmp.ne.s32.totalorder %s69, %s71
      %p78 = scmp.eq.s32.totalorder %s19, 1
      %p79 = por %p77, %p78
      %p80 = scmp.ne.s32.totalorder %s71, %s72
      %p81 = scmp.eq.s32.totalorder %s19, 0
      %p82 = por %p80, %p81
      %p83 = scmp.ne.s32.totalorder %s71, %s72
      %p84 = scmp.eq.s32.totalorder %s20, 1
      %p85 = por %p83, %p84
      %p87 = scmp.ne.s32.totalorder %s72, %s86
      %p88 = scmp.eq.s32.totalorder %s20, 0
      %p89 = por %p87, %p88
      %s91 = sadd.s32 %s90, 1
      %p94 = scmp.eq.s32.totalorder %s14, 1
      %p95 = scmp.ne.s32.totalorder %s90, %s92
      %p96 = scmp.eq.s32.totalorder %s14, 0
      %p97 = por %p95, %p96
      %p98 = scmp.ne.s32.totalorder %s90, %s92
      %p99 = scmp.eq.s32.totalorder %s19, 1
      %p100 = por %p98, %p99
      %p101 = scmp.ne.s32.totalorder %s92, %s93
      %p102 = scmp.eq.s32.totalorder %s19, 0
      %p103 = por %p101, %p102
      %p104 = scmp.ne.s32.totalorder %s92, %s93
      %p105 = scmp.eq.s32.totalorder %s20, 1
      %p106 = por %p104, %p105
      %p108 = scmp.ne.s32.totalorder %s93, %s107
      %p109 = scmp.eq.s32.totalorder %s20, 0
      %p110 = por %p108, %p109
      %s111 = ssub.s32 %s14, %s21
      %p112 = scmp.eq.s32.totalorder %s111, 0
      %s114 = sadd.s32 %s113, 1
      %s115 = scalar_select %p112, %s113, %s114
      %p118 = pneg %p112
      %p119 = scmp.eq.s32.totalorder %s14, 1
      %p120 = por %p118, %p119
      %p121 = scmp.ne.s32.totalorder %s113, %s116
      %p122 = scmp.eq.s32.totalorder %s14, 0
      %p123 = por %p121, %p122
      %p124 = scmp.ne.s32.totalorder %s113, %s116
      %p125 = scmp.eq.s32.totalorder %s19, 1
      %p126 = por %p124, %p125
      %p127 = scmp.ne.s32.totalorder %s116, %s117
      %p128 = scmp.eq.s32.totalorder %s19, 0
      %p129 = por %p127, %p128
      %p130 = scmp.ne.s32.totalorder %s116, %s117
      %p131 = scmp.eq.s32.totalorder %s20, 1
      %p132 = por %p130, %p131
      %p134 = scmp.ne.s32.totalorder %s117, %s133
      %p135 = scmp.eq.s32.totalorder %s20, 0
      %p136 = por %p134, %p135
      %p137 = scmp.le.s32.totalorder 1, %s14
      %p138 = scmp.lt.s32.totalorder %s14, 3
      %p139 = pnand %p137, %p138
      %p140 = pneg %p139
      // Predicated region
      $region9: #{tpu_custom_call.1} parent=5 // pred_check
        _
      $region10: #{tpu_custom_call.1} parent=5 // pred_check_branch
        %142 = sbr.rel (%p139) target = $region12
      $region11: #{tpu_custom_call.1} parent=5 // pred_region
        %s143 = ssub.s32 %s14, 1
        // Predicated region
        $region13: #{tpu_custom_call.1} parent=11 // pred_check
          %p144 = pneg %p61
        $region14: #{tpu_custom_call.1} parent=11 // pred_check_branch
          %146 = sbr.rel (%p144) target = $region16
        $region15: #{tpu_custom_call.1} parent=11 // pred_region
          _
        $region16: #{tpu_custom_call.1} parent=11 // pred_fallthru
          _
        // Predicated region
        $region17: #{tpu_custom_call.1} parent=11 // pred_check
          %p147 = pneg %p82
        $region18: #{tpu_custom_call.1} parent=11 // pred_check_branch
          %149 = sbr.rel (%p147) target = $region20
        $region19: #{tpu_custom_call.1} parent=11 // pred_region
          _
        $region20: #{tpu_custom_call.1} parent=11 // pred_fallthru
          _
        // Predicated region
        $region21: #{tpu_custom_call.1} parent=11 // pred_check
          %p150 = pneg %p103
        $region22: #{tpu_custom_call.1} parent=11 // pred_check_branch
          %152 = sbr.rel (%p150) target = $region24
        $region23: #{tpu_custom_call.1} parent=11 // pred_region
          %s154 = ssub.s32 8192, 8192
          %155 = vsyncadd [#allocation3], %s154
          %s156 = sshll.u32 [#allocation2], 4
          %s157 = int_to_ptr.vmem [resolvable:$true] %s156
          %162 = dma.hbm_to_vmem [thread:$0]  %s3, 8192, %s157, [#allocation3], 128, 128, 8
        $region24: #{tpu_custom_call.1} parent=11 // pred_fallthru
          _
      $region12: #{tpu_custom_call.1} parent=5 // pred_fallthru
        _
      %p163 = scmp.lt.s32.totalorder %s14, 2
      // Predicated region
      $region25: #{tpu_custom_call.1} parent=5 // pred_check
        %p164 = pneg %p163
      $region26: #{tpu_custom_call.1} parent=5 // pred_check_branch
        %166 = sbr.rel (%p164) target = $region28
      $region27: #{tpu_custom_call.1} parent=5 // pred_region
        // Predicated region
        $region29: #{tpu_custom_call.1} parent=27 // pred_check
          %p167 = pneg %p34
        $region30: #{tpu_custom_call.1} parent=27 // pred_check_branch
          %169 = sbr.rel (%p167) target = $region32
        $region31: #{tpu_custom_call.1} parent=27 // pred_region
          %s170 = smul.u32 16, %s14
          %p171 = scmp.lt.s32.totalorder %s170, 31
          %s172 = scalar_select %p171, %s170, 31
          %s173 = smul.addr %s172, 8
          %s174 = scalar_lea.vmem %s0, %s173
          %s175 = smul.u32 16, %s14
        $region32: #{tpu_custom_call.1} parent=27 // pred_fallthru
          _
      $region28: #{tpu_custom_call.1} parent=5 // pred_fallthru
        _
      %p176 = scmp.le.s32.totalorder 1, %s14
      %p177 = scmp.lt.s32.totalorder %s14, 3
      %p178 = pnand %p176, %p177
      %p179 = pneg %p178
      // Predicated region
      $region33: #{tpu_custom_call.1} parent=5 // pred_check
        _
      $region34: #{tpu_custom_call.1} parent=5 // pred_check_branch
        %181 = sbr.rel (%p178) target = $region36
      $region35: #{tpu_custom_call.1} parent=5 // pred_region
        %s182 = ssub.s32 %s14, 1
        // Predicated region
        $region37: #{tpu_custom_call.1} parent=35 // pred_check
          %p183 = pneg %p103
        $region38: #{tpu_custom_call.1} parent=35 // pred_check_branch
          %185 = sbr.rel (%p183) target = $region40
        $region39: #{tpu_custom_call.1} parent=35 // pred_region
          %186 = dma.done [#allocation3], 8192
        $region40: #{tpu_custom_call.1} parent=35 // pred_fallthru
          _
        %s187 = smul.u32 16, %s19
        %p188 = scmp.lt.s32.totalorder %s187, 31
        %s189 = scalar_select %p188, %s187, 31
        %s190 = smul.addr %s189, 8
        %s191 = scalar_lea.vmem %s0, %s190
        %p192 = pneg %p40
        %p193 = pneg %p37
        %p194 = pneg %p61
        %p195 = pneg %p58
        %p196 = pneg %p82
        %p197 = pneg %p79
        %p198 = pneg %p103
        %p199 = pneg %p100
        %p200 = pneg %p129
        %p201 = pneg %p126
        %s202 = sand.u32 %s116, 1
        %s203 = scalar_lea.sflag [#allocation4], %s202
        %s204 = sand.u32 %s116, 1
        %s205 = smul.addr %s204, 128
        %s206 = scalar_lea.vmem [#allocation5], %s205
        %s207 = smul.u32 16, %s19
        %p208 = scmp.lt.s32.totalorder %s207, 31
        %s209 = scalar_select %p208, %s207, 31
        %s210 = smul.addr %s209, 8
        %s211 = scalar_lea.vmem %s0, %s210
        %s212 = smul.u32 16, %s19
        %s213 = smul.u32 16, %s19
        %v214 = vld [vmem:[%s211] sm:$0xff]
        %v215 = vld [vmem:[%s211 + $0x8] sm:$0xff]
        %v216 = vld [vmem:[%s211 + $0x10] sm:$0xff]
        %v217 = vld [vmem:[%s211 + $0x18] sm:$0xff]
        %v218 = vld [vmem:[%s211 + $0x20] sm:$0xff]
        %v219 = vld [vmem:[%s211 + $0x28] sm:$0xff]
        %v220 = vld [vmem:[%s211 + $0x30] sm:$0xff]
        %v221 = vld [vmem:[%s211 + $0x38] sm:$0xff]
        %v222 = vld [vmem:[%s211 + $0x40] sm:$0xff]
        %v223 = vld [vmem:[%s211 + $0x48] sm:$0xff]
        %v224 = vld [vmem:[%s211 + $0x50] sm:$0xff]
        %v225 = vld [vmem:[%s211 + $0x58] sm:$0xff]
        %v226 = vld [vmem:[%s211 + $0x60] sm:$0xff]
        %v227 = vld [vmem:[%s211 + $0x68] sm:$0xff]
        %v228 = vld [vmem:[%s211 + $0x70] sm:$0xff]
        %v229 = vld [vmem:[%s211 + $0x78] sm:$0xff]
        %v230 = vld [vmem:[%s2] sm:$0xff]
        %v231 = vld [vmem:[%s1] sm:$0x1]
        %233 = vset.pattern.permute.xlu0 0
        %234 = vperm.xlu0 %233, %v231
        %v235 = vpop.permute.xlu0 %234
        %v237 = vlaneseq
        %v238 = vshrl.u32 %v237, 7
        %v239 = vsub.s32 0, %v238
        %v240 = vrot.slane %v235, %v239
        %v241 = vmul.f32 %v240, %v230
        %242 = vset.pattern.permute.xlu0 1
        %243 = vperm.xlu0 %242, %v231
        %v244 = vpop.permute.xlu0 %243
        %v246 = vlaneseq
        %v247 = vshrl.u32 %v246, 7
        %v248 = vsub.s32 0, %v247
        %v249 = vrot.slane %v244, %v248
        %v250 = vmul.f32 %v249, %v230
        %v252 = vrot.slane %v250, 1
        %v254 = vadd.f32 %v241, %v252
        %v256 = vrot.slane %v230, 2
        %v258 = vadd.f32 %v254, %v256
        %v259 = vmul.f32 %v230, %v230
        %260 = vset.pattern.permute.xlu0 2
        %261 = vperm.xlu0 %260, %v231
        %v262 = vpop.permute.xlu0 %261
        %v264 = vlaneseq
        %v265 = vshrl.u32 %v264, 7
        %v266 = vsub.s32 0, %v265
        %v267 = vrot.slane %v262, %v266
        %v268 = vmul.f32 %v267, %v259
        %269 = vset.pattern.permute.xlu0 3
        %270 = vperm.xlu0 %269, %v231
        %v271 = vpop.permute.xlu0 %270
        %v273 = vlaneseq
        %v274 = vshrl.u32 %v273, 7
        %v275 = vsub.s32 0, %v274
        %v276 = vrot.slane %v271, %v275
        %v277 = vmul.f32 %v276, %v259
        %v279 = vrot.slane %v277, 1
        %v281 = vadd.f32 %v268, %v279
        %v282 = vmul.f32 %v231, 2.0
        %v283 = vrot.slane %v230, 1
        %v285 = vmul.f32 %v230, %v283
        %287 = vset.pattern.permute.xlu0 4
        %288 = vperm.xlu0 %287, %v282
        %v289 = vpop.permute.xlu0 %288
        %v291 = vlaneseq
        %v292 = vshrl.u32 %v291, 7
        %v293 = vsub.s32 0, %v292
        %v294 = vrot.slane %v289, %v293
        %v295 = vmul.f32 %v294, %v285
        %v296 = vadd.f32 %v281, %v295
        %v297 = vadd.f32 %v296, 1e-05
        %v298 = vrsqrt.pop %v297
        %v300 = vrot.slane %v298, 5
        %v302 = vmul.f32 %v230, %v300
        %v304 = vrot.slane %v302, 3
        %v306 = vmul.f32 %v258, %v304
        %v308 = vrot.slane %v306, 4
        %v310 = vsub.f32 %v230, %v308
        %v311 = vmax.f32 %v214, 0.0
        %v312 = vmax.f32 %v215, 0.0
        %v313 = vmax.f32 %v216, 0.0
        %v314 = vmax.f32 %v217, 0.0
        %v315 = vmax.f32 %v218, 0.0
        %v316 = vmax.f32 %v219, 0.0
        %v317 = vmax.f32 %v220, 0.0
        %v318 = vmax.f32 %v221, 0.0
        %v319 = vmax.f32 %v222, 0.0
        %v320 = vmax.f32 %v223, 0.0
        %v321 = vmax.f32 %v224, 0.0
        %v322 = vmax.f32 %v225, 0.0
        %v323 = vmax.f32 %v226, 0.0
        %v324 = vmax.f32 %v227, 0.0
        %v325 = vmax.f32 %v228, 0.0
        %v326 = vmax.f32 %v229, 0.0
        %v327 = vmin.f32 %v311, 10.0
        %v328 = vmin.f32 %v312, 10.0
        %v329 = vmin.f32 %v313, 10.0
        %v330 = vmin.f32 %v314, 10.0
        %v331 = vmin.f32 %v315, 10.0
        %v332 = vmin.f32 %v316, 10.0
        %v333 = vmin.f32 %v317, 10.0
        %v334 = vmin.f32 %v318, 10.0
        %v335 = vmin.f32 %v319, 10.0
        %v336 = vmin.f32 %v320, 10.0
        %v337 = vmin.f32 %v321, 10.0
        %v338 = vmin.f32 %v322, 10.0
        %v339 = vmin.f32 %v323, 10.0
        %v340 = vmin.f32 %v324, 10.0
        %v341 = vmin.f32 %v325, 10.0
        %v342 = vmin.f32 %v326, 10.0
        %v343 = vmul.f32 %v327, 0.1
        %v344 = vmul.f32 %v328, 0.1
        %v345 = vmul.f32 %v329, 0.1
        %v346 = vmul.f32 %v330, 0.1
        %v347 = vmul.f32 %v331, 0.1
        %v348 = vmul.f32 %v332, 0.1
        %v349 = vmul.f32 %v333, 0.1
        %v350 = vmul.f32 %v334, 0.1
        %v351 = vmul.f32 %v335, 0.1
        %v352 = vmul.f32 %v336, 0.1
        %v353 = vmul.f32 %v337, 0.1
        %v354 = vmul.f32 %v338, 0.1
        %v355 = vmul.f32 %v339, 0.1
        %v356 = vmul.f32 %v340, 0.1
        %v357 = vmul.f32 %v341, 0.1
        %v358 = vmul.f32 %v342, 0.1
        %v359 = vmul.f32 %v343, 32.0
        %v360 = vmul.f32 %v344, 32.0
        %v361 = vmul.f32 %v345, 32.0
        %v362 = vmul.f32 %v346, 32.0
        %v363 = vmul.f32 %v347, 32.0
        %v364 = vmul.f32 %v348, 32.0
        %v365 = vmul.f32 %v349, 32.0
        %v366 = vmul.f32 %v350, 32.0
        %v367 = vmul.f32 %v351, 32.0
        %v368 = vmul.f32 %v352, 32.0
        %v369 = vmul.f32 %v353, 32.0
        %v370 = vmul.f32 %v354, 32.0
        %v371 = vmul.f32 %v355, 32.0
        %v372 = vmul.f32 %v356, 32.0
        %v373 = vmul.f32 %v357, 32.0
        %v374 = vmul.f32 %v358, 32.0
        %v375 = vfloor.f32 %v359
        %v376 = vfloor.f32 %v360
        %v377 = vfloor.f32 %v361
        %v378 = vfloor.f32 %v362
        %v379 = vfloor.f32 %v363
        %v380 = vfloor.f32 %v364
        %v381 = vfloor.f32 %v365
        %v382 = vfloor.f32 %v366
        %v383 = vfloor.f32 %v367
        %v384 = vfloor.f32 %v368
        %v385 = vfloor.f32 %v369
        %v386 = vfloor.f32 %v370
        %v387 = vfloor.f32 %v371
        %v388 = vfloor.f32 %v372
        %v389 = vfloor.f32 %v373
        %v390 = vfloor.f32 %v374
        %v391 = vcvt.f32.s32.to.zero.pseudo %v375
        %v392 = vcvt.f32.s32.to.zero.pseudo %v376
        %v393 = vcvt.f32.s32.to.zero.pseudo %v377
        %v394 = vcvt.f32.s32.to.zero.pseudo %v378
        %v395 = vcvt.f32.s32.to.zero.pseudo %v379
        %v396 = vcvt.f32.s32.to.zero.pseudo %v380
        %v397 = vcvt.f32.s32.to.zero.pseudo %v381
        %v398 = vcvt.f32.s32.to.zero.pseudo %v382
        %v399 = vcvt.f32.s32.to.zero.pseudo %v383
        %v400 = vcvt.f32.s32.to.zero.pseudo %v384
        %v401 = vcvt.f32.s32.to.zero.pseudo %v385
        %v402 = vcvt.f32.s32.to.zero.pseudo %v386
        %v403 = vcvt.f32.s32.to.zero.pseudo %v387
        %v404 = vcvt.f32.s32.to.zero.pseudo %v388
        %v405 = vcvt.f32.s32.to.zero.pseudo %v389
        %v406 = vcvt.f32.s32.to.zero.pseudo %v390
        %vm407 = vcmp.lt.s32.totalorder %v391, 31
        %v408 = vsel %vm407, %v391, 31
        %vm409 = vcmp.lt.s32.totalorder %v392, 31
        %v410 = vsel %vm409, %v392, 31
        %vm411 = vcmp.lt.s32.totalorder %v393, 31
        %v412 = vsel %vm411, %v393, 31
        %vm413 = vcmp.lt.s32.totalorder %v394, 31
        %v414 = vsel %vm413, %v394, 31
        %vm415 = vcmp.lt.s32.totalorder %v395, 31
        %v416 = vsel %vm415, %v395, 31
        %vm417 = vcmp.lt.s32.totalorder %v396, 31
        %v418 = vsel %vm417, %v396, 31
        %vm419 = vcmp.lt.s32.totalorder %v397, 31
        %v420 = vsel %vm419, %v397, 31
        %vm421 = vcmp.lt.s32.totalorder %v398, 31
        %v422 = vsel %vm421, %v398, 31
        %vm423 = vcmp.lt.s32.totalorder %v399, 31
        %v424 = vsel %vm423, %v399, 31
        %vm425 = vcmp.lt.s32.totalorder %v400, 31
        %v426 = vsel %vm425, %v400, 31
        %vm427 = vcmp.lt.s32.totalorder %v401, 31
        %v428 = vsel %vm427, %v401, 31
        %vm429 = vcmp.lt.s32.totalorder %v402, 31
        %v430 = vsel %vm429, %v402, 31
        %vm431 = vcmp.lt.s32.totalorder %v403, 31
        %v432 = vsel %vm431, %v403, 31
        %vm433 = vcmp.lt.s32.totalorder %v404, 31
        %v434 = vsel %vm433, %v404, 31
        %vm435 = vcmp.lt.s32.totalorder %v405, 31
        %v436 = vsel %vm435, %v405, 31
        %vm437 = vcmp.lt.s32.totalorder %v406, 31
        %v438 = vsel %vm437, %v406, 31
        %v439 = vmin.f32 %v311, 1.0
        %v440 = vmin.f32 %v312, 1.0
        %v441 = vmin.f32 %v313, 1.0
        %v442 = vmin.f32 %v314, 1.0
        %v443 = vmin.f32 %v315, 1.0
        %v444 = vmin.f32 %v316, 1.0
        %v445 = vmin.f32 %v317, 1.0
        %v446 = vmin.f32 %v318, 1.0
        %v447 = vmin.f32 %v319, 1.0
        %v448 = vmin.f32 %v320, 1.0
        %v449 = vmin.f32 %v321, 1.0
        %v450 = vmin.f32 %v322, 1.0
        %v451 = vmin.f32 %v323, 1.0
        %v452 = vmin.f32 %v324, 1.0
        %v453 = vmin.f32 %v325, 1.0
        %v454 = vmin.f32 %v326, 1.0
        %v455 = vmul.f32 %v439, 32.0
        %v456 = vmul.f32 %v440, 32.0
        %v457 = vmul.f32 %v441, 32.0
        %v458 = vmul.f32 %v442, 32.0
        %v459 = vmul.f32 %v443, 32.0
        %v460 = vmul.f32 %v444, 32.0
        %v461 = vmul.f32 %v445, 32.0
        %v462 = vmul.f32 %v446, 32.0
        %v463 = vmul.f32 %v447, 32.0
        %v464 = vmul.f32 %v448, 32.0
        %v465 = vmul.f32 %v449, 32.0
        %v466 = vmul.f32 %v450, 32.0
        %v467 = vmul.f32 %v451, 32.0
        %v468 = vmul.f32 %v452, 32.0
        %v469 = vmul.f32 %v453, 32.0
        %v470 = vmul.f32 %v454, 32.0
        %v471 = vfloor.f32 %v455
        %v472 = vfloor.f32 %v456
        %v473 = vfloor.f32 %v457
        %v474 = vfloor.f32 %v458
        %v475 = vfloor.f32 %v459
        %v476 = vfloor.f32 %v460
        %v477 = vfloor.f32 %v461
        %v478 = vfloor.f32 %v462
        %v479 = vfloor.f32 %v463
        %v480 = vfloor.f32 %v464
        %v481 = vfloor.f32 %v465
        %v482 = vfloor.f32 %v466
        %v483 = vfloor.f32 %v467
        %v484 = vfloor.f32 %v468
        %v485 = vfloor.f32 %v469
        %v486 = vfloor.f32 %v470
        %v487 = vcvt.f32.s32.to.zero.pseudo %v471
        %v488 = vcvt.f32.s32.to.zero.pseudo %v472
        %v489 = vcvt.f32.s32.to.zero.pseudo %v473
        %v490 = vcvt.f32.s32.to.zero.pseudo %v474
        %v491 = vcvt.f32.s32.to.zero.pseudo %v475
        %v492 = vcvt.f32.s32.to.zero.pseudo %v476
        %v493 = vcvt.f32.s32.to.zero.pseudo %v477
        %v494 = vcvt.f32.s32.to.zero.pseudo %v478
        %v495 = vcvt.f32.s32.to.zero.pseudo %v479
        %v496 = vcvt.f32.s32.to.zero.pseudo %v480
        %v497 = vcvt.f32.s32.to.zero.pseudo %v481
        %v498 = vcvt.f32.s32.to.zero.pseudo %v482
        %v499 = vcvt.f32.s32.to.zero.pseudo %v483
        %v500 = vcvt.f32.s32.to.zero.pseudo %v484
        %v501 = vcvt.f32.s32.to.zero.pseudo %v485
        %v502 = vcvt.f32.s32.to.zero.pseudo %v486
        %vm503 = vcmp.lt.s32.totalorder %v487, 31
        %v504 = vsel %vm503, %v487, 31
        %vm505 = vcmp.lt.s32.totalorder %v488, 31
        %v506 = vsel %vm505, %v488, 31
        %vm507 = vcmp.lt.s32.totalorder %v489, 31
        %v508 = vsel %vm507, %v489, 31
        %vm509 = vcmp.lt.s32.totalorder %v490, 31
        %v510 = vsel %vm509, %v490, 31
        %vm511 = vcmp.lt.s32.totalorder %v491, 31
        %v512 = vsel %vm511, %v491, 31
        %vm513 = vcmp.lt.s32.totalorder %v492, 31
        %v514 = vsel %vm513, %v492, 31
        %vm515 = vcmp.lt.s32.totalorder %v493, 31
        %v516 = vsel %vm515, %v493, 31
        %vm517 = vcmp.lt.s32.totalorder %v494, 31
        %v518 = vsel %vm517, %v494, 31
        %vm519 = vcmp.lt.s32.totalorder %v495, 31
        %v520 = vsel %vm519, %v495, 31
        %vm521 = vcmp.lt.s32.totalorder %v496, 31
        %v522 = vsel %vm521, %v496, 31
        %vm523 = vcmp.lt.s32.totalorder %v497, 31
        %v524 = vsel %vm523, %v497, 31
        %vm525 = vcmp.lt.s32.totalorder %v498, 31
        %v526 = vsel %vm525, %v498, 31
        %vm527 = vcmp.lt.s32.totalorder %v499, 31
        %v528 = vsel %vm527, %v499, 31
        %vm529 = vcmp.lt.s32.totalorder %v500, 31
        %v530 = vsel %vm529, %v500, 31
        %vm531 = vcmp.lt.s32.totalorder %v501, 31
        %v532 = vsel %vm531, %v501, 31
        %vm533 = vcmp.lt.s32.totalorder %v502, 31
        %v534 = vsel %vm533, %v502, 31
        %v535 = vadd.s32 %v504, 32
        %v536 = vadd.s32 %v506, 32
        %v537 = vadd.s32 %v508, 32
        %v538 = vadd.s32 %v510, 32
        %v539 = vadd.s32 %v512, 32
        %v540 = vadd.s32 %v514, 32
        %v541 = vadd.s32 %v516, 32
        %v542 = vadd.s32 %v518, 32
        %v543 = vadd.s32 %v520, 32
        %v544 = vadd.s32 %v522, 32
        %v545 = vadd.s32 %v524, 32
        %v546 = vadd.s32 %v526, 32
        %v547 = vadd.s32 %v528, 32
        %v548 = vadd.s32 %v530, 32
        %v549 = vadd.s32 %v532, 32
        %v550 = vadd.s32 %v534, 32
        %v551 = vlaneseq
        %v552 = vand.u32 %v551, 127
        %553 = vset.pattern.permute.xlu0 0
        %554 = vperm.xlu0 %553, %v408
        %v555 = vpop.permute.xlu0 %554
        %556 = vset.pattern.permute.xlu0 0
        %557 = vperm.xlu0 %556, %v410
        %v558 = vpop.permute.xlu0 %557
        %559 = vset.pattern.permute.xlu0 0
        %560 = vperm.xlu0 %559, %v412
        %v561 = vpop.permute.xlu0 %560
        %562 = vset.pattern.permute.xlu0 0
        %563 = vperm.xlu0 %562, %v414
        %v564 = vpop.permute.xlu0 %563
        %565 = vset.pattern.permute.xlu0 0
        %566 = vperm.xlu0 %565, %v416
        %v567 = vpop.permute.xlu0 %566
        %568 = vset.pattern.permute.xlu0 0
        %569 = vperm.xlu0 %568, %v418
        %v570 = vpop.permute.xlu0 %569
        %571 = vset.pattern.permute.xlu0 0
        %572 = vperm.xlu0 %571, %v420
        %v573 = vpop.permute.xlu0 %572
        %574 = vset.pattern.permute.xlu0 0
        %575 = vperm.xlu0 %574, %v422
        %v576 = vpop.permute.xlu0 %575
        %577 = vset.pattern.permute.xlu0 0
        %578 = vperm.xlu0 %577, %v424
        %v579 = vpop.permute.xlu0 %578
        %580 = vset.pattern.permute.xlu0 0
        %581 = vperm.xlu0 %580, %v426
        %v582 = vpop.permute.xlu0 %581
        %583 = vset.pattern.permute.xlu0 0
        %584 = vperm.xlu0 %583, %v428
        %v585 = vpop.permute.xlu0 %584
        %586 = vset.pattern.permute.xlu0 0
        %587 = vperm.xlu0 %586, %v430
        %v588 = vpop.permute.xlu0 %587
        %589 = vset.pattern.permute.xlu0 0
        %590 = vperm.xlu0 %589, %v432
        %v591 = vpop.permute.xlu0 %590
        %592 = vset.pattern.permute.xlu0 0
        %593 = vperm.xlu0 %592, %v434
        %v594 = vpop.permute.xlu0 %593
        %595 = vset.pattern.permute.xlu0 0
        %596 = vperm.xlu0 %595, %v436
        %v597 = vpop.permute.xlu0 %596
        %598 = vset.pattern.permute.xlu0 0
        %599 = vperm.xlu0 %598, %v438
        %v600 = vpop.permute.xlu0 %599
        %vm601 = vcmp.eq.s32.totalorder %v552, %v555
        %vm602 = vcmp.eq.s32.totalorder %v552, %v558
        %vm603 = vcmp.eq.s32.totalorder %v552, %v561
        %vm604 = vcmp.eq.s32.totalorder %v552, %v564
        %vm605 = vcmp.eq.s32.totalorder %v552, %v567
        %vm606 = vcmp.eq.s32.totalorder %v552, %v570
        %vm607 = vcmp.eq.s32.totalorder %v552, %v573
        %vm608 = vcmp.eq.s32.totalorder %v552, %v576
        %vm609 = vcmp.eq.s32.totalorder %v552, %v579
        %vm610 = vcmp.eq.s32.totalorder %v552, %v582
        %vm611 = vcmp.eq.s32.totalorder %v552, %v585
        %vm612 = vcmp.eq.s32.totalorder %v552, %v588
        %vm613 = vcmp.eq.s32.totalorder %v552, %v591
        %vm614 = vcmp.eq.s32.totalorder %v552, %v594
        %vm615 = vcmp.eq.s32.totalorder %v552, %v597
        %vm616 = vcmp.eq.s32.totalorder %v552, %v600
        %617 = vset.pattern.permute.xlu0 1
        %618 = vperm.xlu0 %617, %v535
        %v619 = vpop.permute.xlu0 %618
        %620 = vset.pattern.permute.xlu0 1
        %621 = vperm.xlu0 %620, %v536
        %v622 = vpop.permute.xlu0 %621
        %623 = vset.pattern.permute.xlu0 1
        %624 = vperm.xlu0 %623, %v537
        %v625 = vpop.permute.xlu0 %624
        %626 = vset.pattern.permute.xlu0 1
        %627 = vperm.xlu0 %626, %v538
        %v628 = vpop.permute.xlu0 %627
        %629 = vset.pattern.permute.xlu0 1
        %630 = vperm.xlu0 %629, %v539
        %v631 = vpop.permute.xlu0 %630
        %632 = vset.pattern.permute.xlu0 1
        %633 = vperm.xlu0 %632, %v540
        %v634 = vpop.permute.xlu0 %633
        %635 = vset.pattern.permute.xlu0 1
        %636 = vperm.xlu0 %635, %v541
        %v637 = vpop.permute.xlu0 %636
        %638 = vset.pattern.permute.xlu0 1
        %639 = vperm.xlu0 %638, %v542
        %v640 = vpop.permute.xlu0 %639
        %641 = vset.pattern.permute.xlu0 1
        %642 = vperm.xlu0 %641, %v543
        %v643 = vpop.permute.xlu0 %642
        %644 = vset.pattern.permute.xlu0 1
        %645 = vperm.xlu0 %644, %v544
        %v646 = vpop.permute.xlu0 %645
        %647 = vset.pattern.permute.xlu0 1
        %648 = vperm.xlu0 %647, %v545
        %v649 = vpop.permute.xlu0 %648
        %650 = vset.pattern.permute.xlu0 1
        %651 = vperm.xlu0 %650, %v546
        %v652 = vpop.permute.xlu0 %651
        %653 = vset.pattern.permute.xlu0 1
        %654 = vperm.xlu0 %653, %v547
        %v655 = vpop.permute.xlu0 %654
        %656 = vset.pattern.permute.xlu0 1
        %657 = vperm.xlu0 %656, %v548
        %v658 = vpop.permute.xlu0 %657
        %659 = vset.pattern.permute.xlu0 1
        %660 = vperm.xlu0 %659, %v549
        %v661 = vpop.permute.xlu0 %660
        %662 = vset.pattern.permute.xlu0 1
        %663 = vperm.xlu0 %662, %v550
        %v664 = vpop.permute.xlu0 %663
        %vm665 = vcmp.eq.s32.totalorder %v552, %v619
        %vm666 = vcmp.eq.s32.totalorder %v552, %v622
        %vm667 = vcmp.eq.s32.totalorder %v552, %v625
        %vm668 = vcmp.eq.s32.totalorder %v552, %v628
        %vm669 = vcmp.eq.s32.totalorder %v552, %v631
        %vm670 = vcmp.eq.s32.totalorder %v552, %v634
        %vm671 = vcmp.eq.s32.totalorder %v552, %v637
        %vm672 = vcmp.eq.s32.totalorder %v552, %v640
        %vm673 = vcmp.eq.s32.totalorder %v552, %v643
        %vm674 = vcmp.eq.s32.totalorder %v552, %v646
        %vm675 = vcmp.eq.s32.totalorder %v552, %v649
        %vm676 = vcmp.eq.s32.totalorder %v552, %v652
        %vm677 = vcmp.eq.s32.totalorder %v552, %v655
        %vm678 = vcmp.eq.s32.totalorder %v552, %v658
        %vm679 = vcmp.eq.s32.totalorder %v552, %v661
        %vm680 = vcmp.eq.s32.totalorder %v552, %v664
        %vm681 = vmor %vm601, %vm665
        %vm682 = vmor %vm602, %vm666
        %vm683 = vmor %vm603, %vm667
        %vm684 = vmor %vm604, %vm668
        %vm685 = vmor %vm605, %vm669
        %vm686 = vmor %vm606, %vm670
        %vm687 = vmor %vm607, %vm671
        %vm688 = vmor %vm608, %vm672
        %vm689 = vmor %vm609, %vm673
        %vm690 = vmor %vm610, %vm674
        %vm691 = vmor %vm611, %vm675
        %vm692 = vmor %vm612, %vm676
        %vm693 = vmor %vm613, %vm677
        %vm694 = vmor %vm614, %vm678
        %vm695 = vmor %vm615, %vm679
        %vm696 = vmor %vm616, %vm680
        %v697 = vsel %vm681, 1, 0
        %v698 = vsel %vm682, 1, 0
        %v699 = vsel %vm683, 1, 0
        %v700 = vsel %vm684, 1, 0
        %v701 = vsel %vm685, 1, 0
        %v702 = vsel %vm686, 1, 0
        %v703 = vsel %vm687, 1, 0
        %v704 = vsel %vm688, 1, 0
        %v705 = vsel %vm689, 1, 0
        %v706 = vsel %vm690, 1, 0
        %v707 = vsel %vm691, 1, 0
        %v708 = vsel %vm692, 1, 0
        %v709 = vsel %vm693, 1, 0
        %v710 = vsel %vm694, 1, 0
        %v711 = vsel %vm695, 1, 0
        %v712 = vsel %vm696, 1, 0
        %v713 = vcvt.s32.f32 %v697
        %v714 = vcvt.s32.f32 %v698
        %v715 = vcvt.s32.f32 %v699
        %v716 = vcvt.s32.f32 %v700
        %v717 = vcvt.s32.f32 %v701
        %v718 = vcvt.s32.f32 %v702
        %v719 = vcvt.s32.f32 %v703
        %v720 = vcvt.s32.f32 %v704
        %v721 = vcvt.s32.f32 %v705
        %v722 = vcvt.s32.f32 %v706
        %v723 = vcvt.s32.f32 %v707
        %v724 = vcvt.s32.f32 %v708
        %v725 = vcvt.s32.f32 %v709
        %v726 = vcvt.s32.f32 %v710
        %v727 = vcvt.s32.f32 %v711
        %v728 = vcvt.s32.f32 %v712
        %730 = vset.pattern.permute.xlu0 0
        %731 = vperm.xlu0 %730, %v214
        %v732 = vpop.permute.xlu0 %731
        %735 = vset.pattern.permute.xlu0 0
        %736 = vperm.xlu0 %735, %v215
        %v737 = vpop.permute.xlu0 %736
        %740 = vset.pattern.permute.xlu0 0
        %741 = vperm.xlu0 %740, %v216
        %v742 = vpop.permute.xlu0 %741
        %745 = vset.pattern.permute.xlu0 0
        %746 = vperm.xlu0 %745, %v217
        %v747 = vpop.permute.xlu0 %746
        %750 = vset.pattern.permute.xlu0 0
        %751 = vperm.xlu0 %750, %v218
        %v752 = vpop.permute.xlu0 %751
        %755 = vset.pattern.permute.xlu0 0
        %756 = vperm.xlu0 %755, %v219
        %v757 = vpop.permute.xlu0 %756
        %760 = vset.pattern.permute.xlu0 0
        %761 = vperm.xlu0 %760, %v220
        %v762 = vpop.permute.xlu0 %761
        %765 = vset.pattern.permute.xlu0 0
        %766 = vperm.xlu0 %765, %v221
        %v767 = vpop.permute.xlu0 %766
        %770 = vset.pattern.permute.xlu0 0
        %771 = vperm.xlu0 %770, %v222
        %v772 = vpop.permute.xlu0 %771
        %775 = vset.pattern.permute.xlu0 0
        %776 = vperm.xlu0 %775, %v223
        %v777 = vpop.permute.xlu0 %776
        %780 = vset.pattern.permute.xlu0 0
        %781 = vperm.xlu0 %780, %v224
        %v782 = vpop.permute.xlu0 %781
        %785 = vset.pattern.permute.xlu0 0
        %786 = vperm.xlu0 %785, %v225
        %v787 = vpop.permute.xlu0 %786
        %790 = vset.pattern.permute.xlu0 0
        %791 = vperm.xlu0 %790, %v226
        %v792 = vpop.permute.xlu0 %791
        %795 = vset.pattern.permute.xlu0 0
        %796 = vperm.xlu0 %795, %v227
        %v797 = vpop.permute.xlu0 %796
        %800 = vset.pattern.permute.xlu0 0
        %801 = vperm.xlu0 %800, %v228
        %v802 = vpop.permute.xlu0 %801
        %805 = vset.pattern.permute.xlu0 0
        %806 = vperm.xlu0 %805, %v229
        %v807 = vpop.permute.xlu0 %806
        %v809 = vlaneseq
        %v810 = vshrl.u32 %v809, 7
        %v811 = vsub.s32 0, %v810
        %v812 = vrot.slane %v230, %v811
        %v813 = vmul.f32 %v732, %v812
        %v814 = vmul.f32 %v737, %v812
        %v815 = vmul.f32 %v742, %v812
        %v816 = vmul.f32 %v747, %v812
        %v817 = vmul.f32 %v752, %v812
        %v818 = vmul.f32 %v757, %v812
        %v819 = vmul.f32 %v762, %v812
        %v820 = vmul.f32 %v767, %v812
        %v821 = vmul.f32 %v772, %v812
        %v822 = vmul.f32 %v777, %v812
        %v823 = vmul.f32 %v782, %v812
        %v824 = vmul.f32 %v787, %v812
        %v825 = vmul.f32 %v792, %v812
        %v826 = vmul.f32 %v797, %v812
        %v827 = vmul.f32 %v802, %v812
        %v828 = vmul.f32 %v807, %v812
        %829 = vset.pattern.permute.xlu0 1
        %830 = vperm.xlu0 %829, %v214
        %v831 = vpop.permute.xlu0 %830
        %833 = vset.pattern.permute.xlu0 1
        %834 = vperm.xlu0 %833, %v215
        %v835 = vpop.permute.xlu0 %834
        %837 = vset.pattern.permute.xlu0 1
        %838 = vperm.xlu0 %837, %v216
        %v839 = vpop.permute.xlu0 %838
        %841 = vset.pattern.permute.xlu0 1
        %842 = vperm.xlu0 %841, %v217
        %v843 = vpop.permute.xlu0 %842
        %845 = vset.pattern.permute.xlu0 1
        %846 = vperm.xlu0 %845, %v218
        %v847 = vpop.permute.xlu0 %846
        %849 = vset.pattern.permute.xlu0 1
        %850 = vperm.xlu0 %849, %v219
        %v851 = vpop.permute.xlu0 %850
        %853 = vset.pattern.permute.xlu0 1
        %854 = vperm.xlu0 %853, %v220
        %v855 = vpop.permute.xlu0 %854
        %857 = vset.pattern.permute.xlu0 1
        %858 = vperm.xlu0 %857, %v221
        %v859 = vpop.permute.xlu0 %858
        %861 = vset.pattern.permute.xlu0 1
        %862 = vperm.xlu0 %861, %v222
        %v863 = vpop.permute.xlu0 %862
        %865 = vset.pattern.permute.xlu0 1
        %866 = vperm.xlu0 %865, %v223
        %v867 = vpop.permute.xlu0 %866
        %869 = vset.pattern.permute.xlu0 1
        %870 = vperm.xlu0 %869, %v224
        %v871 = vpop.permute.xlu0 %870
        %873 = vset.pattern.permute.xlu0 1
        %874 = vperm.xlu0 %873, %v225
        %v875 = vpop.permute.xlu0 %874
        %877 = vset.pattern.permute.xlu0 1
        %878 = vperm.xlu0 %877, %v226
        %v879 = vpop.permute.xlu0 %878
        %881 = vset.pattern.permute.xlu0 1
        %882 = vperm.xlu0 %881, %v227
        %v883 = vpop.permute.xlu0 %882
        %885 = vset.pattern.permute.xlu0 1
        %886 = vperm.xlu0 %885, %v228
        %v887 = vpop.permute.xlu0 %886
        %889 = vset.pattern.permute.xlu0 1
        %890 = vperm.xlu0 %889, %v229
        %v891 = vpop.permute.xlu0 %890
        %v893 = vlaneseq
        %v894 = vshrl.u32 %v893, 7
        %v895 = vsub.s32 1, %v894
        %v896 = vrot.slane %v230, %v895
        %v897 = vmul.f32 %v831, %v896
        %v898 = vmul.f32 %v835, %v896
        %v899 = vmul.f32 %v839, %v896
        %v900 = vmul.f32 %v843, %v896
        %v901 = vmul.f32 %v847, %v896
        %v902 = vmul.f32 %v851, %v896
        %v903 = vmul.f32 %v855, %v896
        %v904 = vmul.f32 %v859, %v896
        %v905 = vmul.f32 %v863, %v896
        %v906 = vmul.f32 %v867, %v896
        %v907 = vmul.f32 %v871, %v896
        %v908 = vmul.f32 %v875, %v896
        %v909 = vmul.f32 %v879, %v896
        %v910 = vmul.f32 %v883, %v896
        %v911 = vmul.f32 %v887, %v896
        %v912 = vmul.f32 %v891, %v896
        %v913 = vadd.f32 %v813, %v897
        %v914 = vadd.f32 %v814, %v898
        %v915 = vadd.f32 %v815, %v899
        %v916 = vadd.f32 %v816, %v900
        %v917 = vadd.f32 %v817, %v901
        %v918 = vadd.f32 %v818, %v902
        %v919 = vadd.f32 %v819, %v903
        %v920 = vadd.f32 %v820, %v904
        %v921 = vadd.f32 %v821, %v905
        %v922 = vadd.f32 %v822, %v906
        %v923 = vadd.f32 %v823, %v907
        %v924 = vadd.f32 %v824, %v908
        %v925 = vadd.f32 %v825, %v909
        %v926 = vadd.f32 %v826, %v910
        %v927 = vadd.f32 %v827, %v911
        %v928 = vadd.f32 %v828, %v912
        %v929 = vlaneseq
        %v930 = vshrl.u32 %v929, 7
        %v931 = vsub.s32 2, %v930
        %v932 = vrot.slane %v230, %v931
        %v933 = vadd.f32 %v913, %v932
        %v934 = vadd.f32 %v914, %v932
        %v935 = vadd.f32 %v915, %v932
        %v936 = vadd.f32 %v916, %v932
        %v937 = vadd.f32 %v917, %v932
        %v938 = vadd.f32 %v918, %v932
        %v939 = vadd.f32 %v919, %v932
        %v940 = vadd.f32 %v920, %v932
        %v941 = vadd.f32 %v921, %v932
        %v942 = vadd.f32 %v922, %v932
        %v943 = vadd.f32 %v923, %v932
        %v944 = vadd.f32 %v924, %v932
        %v945 = vadd.f32 %v925, %v932
        %v946 = vadd.f32 %v926, %v932
        %v947 = vadd.f32 %v927, %v932
        %v948 = vadd.f32 %v928, %v932
        %v949 = vlaneseq
        %v950 = vshrl.u32 %v949, 7
        %v951 = vsub.s32 3, %v950
        %v952 = vrot.slane %v302, %v951
        %v953 = vmul.f32 %v933, %v952
        %v954 = vmul.f32 %v934, %v952
        %v955 = vmul.f32 %v935, %v952
        %v956 = vmul.f32 %v936, %v952
        %v957 = vmul.f32 %v937, %v952
        %v958 = vmul.f32 %v938, %v952
        %v959 = vmul.f32 %v939, %v952
        %v960 = vmul.f32 %v940, %v952
        %v961 = vmul.f32 %v941, %v952
        %v962 = vmul.f32 %v942, %v952
        %v963 = vmul.f32 %v943, %v952
        %v964 = vmul.f32 %v944, %v952
        %v965 = vmul.f32 %v945, %v952
        %v966 = vmul.f32 %v946, %v952
        %v967 = vmul.f32 %v947, %v952
        %v968 = vmul.f32 %v948, %v952
        %v969 = vlaneseq
        %v970 = vshrl.u32 %v969, 7
        %v971 = vsub.s32 4, %v970
        %v972 = vrot.slane %v310, %v971
        %v973 = vadd.f32 %v953, %v972
        %v974 = vadd.f32 %v954, %v972
        %v975 = vadd.f32 %v955, %v972
        %v976 = vadd.f32 %v956, %v972
        %v977 = vadd.f32 %v957, %v972
        %v978 = vadd.f32 %v958, %v972
        %v979 = vadd.f32 %v959, %v972
        %v980 = vadd.f32 %v960, %v972
        %v981 = vadd.f32 %v961, %v972
        %v982 = vadd.f32 %v962, %v972
        %v983 = vadd.f32 %v963, %v972
        %v984 = vadd.f32 %v964, %v972
        %v985 = vadd.f32 %v965, %v972
        %v986 = vadd.f32 %v966, %v972
        %v987 = vadd.f32 %v967, %v972
        %v988 = vadd.f32 %v968, %v972
        %vm989 = vcmp.gt.f32.partialorder %v973, 20.0
        %vm990 = vcmp.gt.f32.partialorder %v974, 20.0
        %vm991 = vcmp.gt.f32.partialorder %v975, 20.0
        %vm992 = vcmp.gt.f32.partialorder %v976, 20.0
        %vm993 = vcmp.gt.f32.partialorder %v977, 20.0
        %vm994 = vcmp.gt.f32.partialorder %v978, 20.0
        %vm995 = vcmp.gt.f32.partialorder %v979, 20.0
        %vm996 = vcmp.gt.f32.partialorder %v980, 20.0
        %vm997 = vcmp.gt.f32.partialorder %v981, 20.0
        %vm998 = vcmp.gt.f32.partialorder %v982, 20.0
        %vm999 = vcmp.gt.f32.partialorder %v983, 20.0
        %vm1000 = vcmp.gt.f32.partialorder %v984, 20.0
        %vm1001 = vcmp.gt.f32.partialorder %v985, 20.0
        %vm1002 = vcmp.gt.f32.partialorder %v986, 20.0
        %vm1003 = vcmp.gt.f32.partialorder %v987, 20.0
        %vm1004 = vcmp.gt.f32.partialorder %v988, 20.0
        %v1005 = vmin.f32 %v973, 20.0
        %v1006 = vmin.f32 %v974, 20.0
        %v1007 = vmin.f32 %v975, 20.0
        %v1008 = vmin.f32 %v976, 20.0
        %v1009 = vmin.f32 %v977, 20.0
        %v1010 = vmin.f32 %v978, 20.0
        %v1011 = vmin.f32 %v979, 20.0
        %v1012 = vmin.f32 %v980, 20.0
        %v1013 = vmin.f32 %v981, 20.0
        %v1014 = vmin.f32 %v982, 20.0
        %v1015 = vmin.f32 %v983, 20.0
        %v1016 = vmin.f32 %v984, 20.0
        %v1017 = vmin.f32 %v985, 20.0
        %v1018 = vmin.f32 %v986, 20.0
        %v1019 = vmin.f32 %v987, 20.0
        %v1020 = vmin.f32 %v988, 20.0
        %v1021 = vmul.f32 %v1005, 1.442695
        %v1022 = vpow.pop %v1021
        %v1023 = vmul.f32 %v1006, 1.442695
        %v1024 = vpow.pop %v1023
        %v1025 = vmul.f32 %v1007, 1.442695
        %v1026 = vpow.pop %v1025
        %v1027 = vmul.f32 %v1008, 1.442695
        %v1028 = vpow.pop %v1027
        %v1029 = vmul.f32 %v1009, 1.442695
        %v1030 = vpow.pop %v1029
        %v1031 = vmul.f32 %v1010, 1.442695
        %v1032 = vpow.pop %v1031
        %v1033 = vmul.f32 %v1011, 1.442695
        %v1034 = vpow.pop %v1033
        %v1035 = vmul.f32 %v1012, 1.442695
        %v1036 = vpow.pop %v1035
        %v1037 = vmul.f32 %v1013, 1.442695
        %v1038 = vpow.pop %v1037
        %v1039 = vmul.f32 %v1014, 1.442695
        %v1040 = vpow.pop %v1039
        %v1041 = vmul.f32 %v1015, 1.442695
        %v1042 = vpow.pop %v1041
        %v1043 = vmul.f32 %v1016, 1.442695
        %v1044 = vpow.pop %v1043
        %v1045 = vmul.f32 %v1017, 1.442695
        %v1046 = vpow.pop %v1045
        %v1047 = vmul.f32 %v1018, 1.442695
        %v1048 = vpow.pop %v1047
        %v1049 = vmul.f32 %v1019, 1.442695
        %v1050 = vpow.pop %v1049
        %v1051 = vmul.f32 %v1020, 1.442695
        %v1052 = vpow.pop %v1051
        %v1053 = vadd.f32 %v1022, 1.0
        %v1054 = vlog2.pop %v1053
        %v1055 = vmul.f32 %v1054, 0.6931472
        %v1056 = vmul.f32 -0.5, %v1022
        %v1057 = vadd.f32 %v1056, 1.0
        %v1058 = vmul.f32 %v1057, %v1022
        %v1059 = vand.u32 2147483647, %v1022
        %vm1060 = vcmp.lt.f32.partialorder %v1059, 0.0004427343
        %v1061 = vsel %vm1060, %v1058, %v1055
        %v1062 = vadd.f32 %v1024, 1.0
        %v1063 = vlog2.pop %v1062
        %v1064 = vmul.f32 %v1063, 0.6931472
        %v1065 = vmul.f32 -0.5, %v1024
        %v1066 = vadd.f32 %v1065, 1.0
        %v1067 = vmul.f32 %v1066, %v1024
        %v1068 = vand.u32 2147483647, %v1024
        %vm1069 = vcmp.lt.f32.partialorder %v1068, 0.0004427343
        %v1070 = vsel %vm1069, %v1067, %v1064
        %v1071 = vadd.f32 %v1026, 1.0
        %v1072 = vlog2.pop %v1071
        %v1073 = vmul.f32 %v1072, 0.6931472
        %v1074 = vmul.f32 -0.5, %v1026
        %v1075 = vadd.f32 %v1074, 1.0
        %v1076 = vmul.f32 %v1075, %v1026
        %v1077 = vand.u32 2147483647, %v1026
        %vm1078 = vcmp.lt.f32.partialorder %v1077, 0.0004427343
        %v1079 = vsel %vm1078, %v1076, %v1073
        %v1080 = vadd.f32 %v1028, 1.0
        %v1081 = vlog2.pop %v1080
        %v1082 = vmul.f32 %v1081, 0.6931472
        %v1083 = vmul.f32 -0.5, %v1028
        %v1084 = vadd.f32 %v1083, 1.0
        %v1085 = vmul.f32 %v1084, %v1028
        %v1086 = vand.u32 2147483647, %v1028
        %vm1087 = vcmp.lt.f32.partialorder %v1086, 0.0004427343
        %v1088 = vsel %vm1087, %v1085, %v1082
        %v1089 = vadd.f32 %v1030, 1.0
        %v1090 = vlog2.pop %v1089
        %v1091 = vmul.f32 %v1090, 0.6931472
        %v1092 = vmul.f32 -0.5, %v1030
        %v1093 = vadd.f32 %v1092, 1.0
        %v1094 = vmul.f32 %v1093, %v1030
        %v1095 = vand.u32 2147483647, %v1030
        %vm1096 = vcmp.lt.f32.partialorder %v1095, 0.0004427343
        %v1097 = vsel %vm1096, %v1094, %v1091
        %v1098 = vadd.f32 %v1032, 1.0
        %v1099 = vlog2.pop %v1098
        %v1100 = vmul.f32 %v1099, 0.6931472
        %v1101 = vmul.f32 -0.5, %v1032
        %v1102 = vadd.f32 %v1101, 1.0
        %v1103 = vmul.f32 %v1102, %v1032
        %v1104 = vand.u32 2147483647, %v1032
        %vm1105 = vcmp.lt.f32.partialorder %v1104, 0.0004427343
        %v1106 = vsel %vm1105, %v1103, %v1100
        %v1107 = vadd.f32 %v1034, 1.0
        %v1108 = vlog2.pop %v1107
        %v1109 = vmul.f32 %v1108, 0.6931472
        %v1110 = vmul.f32 -0.5, %v1034
        %v1111 = vadd.f32 %v1110, 1.0
        %v1112 = vmul.f32 %v1111, %v1034
        %v1113 = vand.u32 2147483647, %v1034
        %vm1114 = vcmp.lt.f32.partialorder %v1113, 0.0004427343
        %v1115 = vsel %vm1114, %v1112, %v1109
        %v1116 = vadd.f32 %v1036, 1.0
        %v1117 = vlog2.pop %v1116
        %v1118 = vmul.f32 %v1117, 0.6931472
        %v1119 = vmul.f32 -0.5, %v1036
        %v1120 = vadd.f32 %v1119, 1.0
        %v1121 = vmul.f32 %v1120, %v1036
        %v1122 = vand.u32 2147483647, %v1036
        %vm1123 = vcmp.lt.f32.partialorder %v1122, 0.0004427343
        %v1124 = vsel %vm1123, %v1121, %v1118
        %v1125 = vadd.f32 %v1038, 1.0
        %v1126 = vlog2.pop %v1125
        %v1127 = vmul.f32 %v1126, 0.6931472
        %v1128 = vmul.f32 -0.5, %v1038
        %v1129 = vadd.f32 %v1128, 1.0
        %v1130 = vmul.f32 %v1129, %v1038
        %v1131 = vand.u32 2147483647, %v1038
        %vm1132 = vcmp.lt.f32.partialorder %v1131, 0.0004427343
        %v1133 = vsel %vm1132, %v1130, %v1127
        %v1134 = vadd.f32 %v1040, 1.0
        %v1135 = vlog2.pop %v1134
        %v1136 = vmul.f32 %v1135, 0.6931472
        %v1137 = vmul.f32 -0.5, %v1040
        %v1138 = vadd.f32 %v1137, 1.0
        %v1139 = vmul.f32 %v1138, %v1040
        %v1140 = vand.u32 2147483647, %v1040
        %vm1141 = vcmp.lt.f32.partialorder %v1140, 0.0004427343
        %v1142 = vsel %vm1141, %v1139, %v1136
        %v1143 = vadd.f32 %v1042, 1.0
        %v1144 = vlog2.pop %v1143
        %v1145 = vmul.f32 %v1144, 0.6931472
        %v1146 = vmul.f32 -0.5, %v1042
        %v1147 = vadd.f32 %v1146, 1.0
        %v1148 = vmul.f32 %v1147, %v1042
        %v1149 = vand.u32 2147483647, %v1042
        %vm1150 = vcmp.lt.f32.partialorder %v1149, 0.0004427343
        %v1151 = vsel %vm1150, %v1148, %v1145
        %v1152 = vadd.f32 %v1044, 1.0
        %v1153 = vlog2.pop %v1152
        %v1154 = vmul.f32 %v1153, 0.6931472
        %v1155 = vmul.f32 -0.5, %v1044
        %v1156 = vadd.f32 %v1155, 1.0
        %v1157 = vmul.f32 %v1156, %v1044
        %v1158 = vand.u32 2147483647, %v1044
        %vm1159 = vcmp.lt.f32.partialorder %v1158, 0.0004427343
        %v1160 = vsel %vm1159, %v1157, %v1154
        %v1161 = vadd.f32 %v1046, 1.0
        %v1162 = vlog2.pop %v1161
        %v1163 = vmul.f32 %v1162, 0.6931472
        %v1164 = vmul.f32 -0.5, %v1046
        %v1165 = vadd.f32 %v1164, 1.0
        %v1166 = vmul.f32 %v1165, %v1046
        %v1167 = vand.u32 2147483647, %v1046
        %vm1168 = vcmp.lt.f32.partialorder %v1167, 0.0004427343
        %v1169 = vsel %vm1168, %v1166, %v1163
        %v1170 = vadd.f32 %v1048, 1.0
        %v1171 = vlog2.pop %v1170
        %v1172 = vmul.f32 %v1171, 0.6931472
        %v1173 = vmul.f32 -0.5, %v1048
        %v1174 = vadd.f32 %v1173, 1.0
        %v1175 = vmul.f32 %v1174, %v1048
        %v1176 = vand.u32 2147483647, %v1048
        %vm1177 = vcmp.lt.f32.partialorder %v1176, 0.0004427343
        %v1178 = vsel %vm1177, %v1175, %v1172
        %v1179 = vadd.f32 %v1050, 1.0
        %v1180 = vlog2.pop %v1179
        %v1181 = vmul.f32 %v1180, 0.6931472
        %v1182 = vmul.f32 -0.5, %v1050
        %v1183 = vadd.f32 %v1182, 1.0
        %v1184 = vmul.f32 %v1183, %v1050
        %v1185 = vand.u32 2147483647, %v1050
        %vm1186 = vcmp.lt.f32.partialorder %v1185, 0.0004427343
        %v1187 = vsel %vm1186, %v1184, %v1181
        %v1188 = vadd.f32 %v1052, 1.0
        %v1189 = vlog2.pop %v1188
        %v1190 = vmul.f32 %v1189, 0.6931472
        %v1191 = vmul.f32 -0.5, %v1052
        %v1192 = vadd.f32 %v1191, 1.0
        %v1193 = vmul.f32 %v1192, %v1052
        %v1194 = vand.u32 2147483647, %v1052
        %vm1195 = vcmp.lt.f32.partialorder %v1194, 0.0004427343
        %v1196 = vsel %vm1195, %v1193, %v1190
        %v1197 = vsel %vm989, %v973, %v1061
        %v1198 = vsel %vm990, %v974, %v1070
        %v1199 = vsel %vm991, %v975, %v1079
        %v1200 = vsel %vm992, %v976, %v1088
        %v1201 = vsel %vm993, %v977, %v1097
        %v1202 = vsel %vm994, %v978, %v1106
        %v1203 = vsel %vm995, %v979, %v1115
        %v1204 = vsel %vm996, %v980, %v1124
        %v1205 = vsel %vm997, %v981, %v1133
        %v1206 = vsel %vm998, %v982, %v1142
        %v1207 = vsel %vm999, %v983, %v1151
        %v1208 = vsel %vm1000, %v984, %v1160
        %v1209 = vsel %vm1001, %v985, %v1169
        %v1210 = vsel %vm1002, %v986, %v1178
        %v1211 = vsel %vm1003, %v987, %v1187
        %v1212 = vsel %vm1004, %v988, %v1196
        %v1213 = vld [vmem:[#allocation2] sm:$0xff]
        %v1214 = vld [vmem:[#allocation2 + $0x8] sm:$0xff]
        %v1215 = vld [vmem:[#allocation2 + $0x10] sm:$0xff]
        %v1216 = vld [vmem:[#allocation2 + $0x18] sm:$0xff]
        %v1217 = vld [vmem:[#allocation2 + $0x20] sm:$0xff]
        %v1218 = vld [vmem:[#allocation2 + $0x28] sm:$0xff]
        %v1219 = vld [vmem:[#allocation2 + $0x30] sm:$0xff]
        %v1220 = vld [vmem:[#allocation2 + $0x38] sm:$0xff]
        %v1221 = vld [vmem:[#allocation2 + $0x40] sm:$0xff]
        %v1222 = vld [vmem:[#allocation2 + $0x48] sm:$0xff]
        %v1223 = vld [vmem:[#allocation2 + $0x50] sm:$0xff]
        %v1224 = vld [vmem:[#allocation2 + $0x58] sm:$0xff]
        %v1225 = vld [vmem:[#allocation2 + $0x60] sm:$0xff]
        %v1226 = vld [vmem:[#allocation2 + $0x68] sm:$0xff]
        %v1227 = vld [vmem:[#allocation2 + $0x70] sm:$0xff]
        %v1228 = vld [vmem:[#allocation2 + $0x78] sm:$0xff]
        %v1229 = vlaneseq
        %v1230 = vshrl.u32 %v1229, 7
        %v1231 = vsub.s32 5, %v1230
        %v1232 = vrot.slane %v230, %v1231
        %1233 = vmatprep.subr.mxu0 0.0
        %1234 = vmatpush1.msra.mxu0 %v1213
        %1235 = vmatprep.subr.mxu0 0.0
        %1236 = vmatpush1.msra.mxu0 %v1214
        %1237 = vmatprep.subr.mxu0 0.0
        %1238 = vmatpush1.msra.mxu0 %v1215
        %1239 = vmatprep.subr.mxu0 0.0
        %1240 = vmatpush1.msra.mxu0 %v1216
        %1241 = vmatprep.subr.mxu0 0.0
        %1242 = vmatpush1.msra.mxu0 %v1217
        %1243 = vmatprep.subr.mxu0 0.0
        %1244 = vmatpush1.msra.mxu0 %v1218
        %1245 = vmatprep.subr.mxu0 0.0
        %1246 = vmatpush1.msra.mxu0 %v1219
        %1247 = vmatprep.subr.mxu0 0.0
        %1248 = vmatpush1.msra.mxu0 %v1220
        %1249 = vmatprep.subr.mxu0 0.0
        %1250 = vmatpush1.msra.mxu0 %v1221
        %1251 = vmatprep.subr.mxu0 0.0
        %1252 = vmatpush1.msra.mxu0 %v1222
        %1253 = vmatprep.subr.mxu0 0.0
        %1254 = vmatpush1.msra.mxu0 %v1223
        %1255 = vmatprep.subr.mxu0 0.0
        %1256 = vmatpush1.msra.mxu0 %v1224
        %1257 = vmatprep.subr.mxu0 0.0
        %1258 = vmatpush1.msra.mxu0 %v1225
        %1259 = vmatprep.subr.mxu0 0.0
        %1260 = vmatpush1.msra.mxu0 %v1226
        %1261 = vmatprep.subr.mxu0 0.0
        %1262 = vmatpush1.msra.mxu0 %v1227
        %1263 = vmatprep.subr.mxu0 0.0
        %1264 = vmatpush1.msra.mxu0 %v1228
        %1265 = vmatprep.subr.mxu0 0.0
        %1266 = vmatpush1.msra.mxu0 0.0
        %1267 = vmatprep.subr.mxu0 0.0
        %1268 = vmatpush1.msra.mxu0 0.0
        %1269 = vmatprep.subr.mxu0 0.0
        %1270 = vmatpush1.msra.mxu0 0.0
        %1271 = vmatprep.subr.mxu0 0.0
        %1272 = vmatpush1.msra.mxu0 0.0
        %1273 = vmatprep.subr.mxu0 0.0
        %1274 = vmatpush1.msra.mxu0 0.0
        %1275 = vmatprep.subr.mxu0 0.0
        %1276 = vmatpush1.msra.mxu0 0.0
        %1277 = vmatprep.subr.mxu0 0.0
        %1278 = vmatpush1.msra.mxu0 0.0
        %1279 = vmatprep.subr.mxu0 0.0
        %1280 = vmatpush1.msra.mxu0 0.0
        %1281 = vmatprep.subr.mxu0 0.0
        %1282 = vmatpush1.msra.mxu0 0.0
        %1283 = vmatprep.subr.mxu0 0.0
        %1284 = vmatpush1.msra.mxu0 0.0
        %1285 = vmatprep.subr.mxu0 0.0
        %1286 = vmatpush1.msra.mxu0 0.0
        %1287 = vmatprep.subr.mxu0 0.0
        %1288 = vmatpush1.msra.mxu0 0.0
        %1289 = vmatprep.subr.mxu0 0.0
        %1290 = vmatpush1.msra.mxu0 0.0
        %1291 = vmatprep.subr.mxu0 0.0
        %1292 = vmatpush1.msra.mxu0 0.0
        %1293 = vmatprep.subr.mxu0 0.0
        %1294 = vmatpush1.msra.mxu0 0.0
        %1295 = vmatprep.subr.mxu0 0.0
        %1296 = vmatpush1.msra.mxu0 0.0
        %1297 = vmatprep.mubr.f32.mxu0 0.0
        %1298 = vmatmul.mubr.f32.gmra.mrb[0].mxu0 %v1197
        %v1299 = vpop.f32.mrb[0].mxu0
        %v1300 = vadd.f32 %v1232, %v1299
        %v1301 = vpop.f32.mrb[0].mxu0
        %1302 = vmatprep.mubr.f32.mxu0 0.0
        %1303 = vmatmul.mubr.f32.gmra.mrb[0].mxu0 %v1198
        %v1304 = vpop.f32.mrb[0].mxu0
        %v1305 = vadd.f32 %v1232, %v1304
        %v1306 = vpop.f32.mrb[0].mxu0
        %1307 = vmatprep.mubr.f32.mxu0 0.0
        %1308 = vmatmul.mubr.f32.gmra.mrb[0].mxu0 %v1199
        %v1309 = vpop.f32.mrb[0].mxu0
        %v1310 = vadd.f32 %v1232, %v1309
        %v1311 = vpop.f32.mrb[0].mxu0
        %1312 = vmatprep.mubr.f32.mxu0 0.0
        %1313 = vmatmul.mubr.f32.gmra.mrb[0].mxu0 %v1200
        %v1314 = vpop.f32.mrb[0].mxu0
        %v1315 = vadd.f32 %v1232, %v1314
        %v1316 = vpop.f32.mrb[0].mxu0
        %1317 = vmatprep.mubr.f32.mxu0 0.0
        %1318 = vmatmul.mubr.f32.gmra.mrb[0].mxu0 %v1201
        %v1319 = vpop.f32.mrb[0].mxu0
        %v1320 = vadd.f32 %v1232, %v1319
        %v1321 = vpop.f32.mrb[0].mxu0
        %1322 = vmatprep.mubr.f32.mxu0 0.0
        %1323 = vmatmul.mubr.f32.gmra.mrb[0].mxu0 %v1202
        %v1324 = vpop.f32.mrb[0].mxu0
        %v1325 = vadd.f32 %v1232, %v1324
        %v1326 = vpop.f32.mrb[0].mxu0
        %1327 = vmatprep.mubr.f32.mxu0 0.0
        %1328 = vmatmul.mubr.f32.gmra.mrb[0].mxu0 %v1203
        %v1329 = vpop.f32.mrb[0].mxu0
        %v1330 = vadd.f32 %v1232, %v1329
        %v1331 = vpop.f32.mrb[0].mxu0
        %1332 = vmatprep.mubr.f32.mxu0 0.0
        %1333 = vmatmul.mubr.f32.gmra.mrb[0].mxu0 %v1204
        %v1334 = vpop.f32.mrb[0].mxu0
        %v1335 = vadd.f32 %v1232, %v1334
        %v1336 = vpop.f32.mrb[0].mxu0
        %1337 = vmatprep.mubr.f32.mxu0 0.0
        %1338 = vmatmul.mubr.f32.gmra.mrb[0].mxu0 %v1205
        %v1339 = vpop.f32.mrb[0].mxu0
        %v1340 = vadd.f32 %v1232, %v1339
        %v1341 = vpop.f32.mrb[0].mxu0
        %1342 = vmatprep.mubr.f32.mxu0 0.0
        %1343 = vmatmul.mubr.f32.gmra.mrb[0].mxu0 %v1206
        %v1344 = vpop.f32.mrb[0].mxu0
        %v1345 = vadd.f32 %v1232, %v1344
        %v1346 = vpop.f32.mrb[0].mxu0
        %1347 = vmatprep.mubr.f32.mxu0 0.0
        %1348 = vmatmul.mubr.f32.gmra.mrb[0].mxu0 %v1207
        %v1349 = vpop.f32.mrb[0].mxu0
        %v1350 = vadd.f32 %v1232, %v1349
        %v1351 = vpop.f32.mrb[0].mxu0
        %1352 = vmatprep.mubr.f32.mxu0 0.0
        %1353 = vmatmul.mubr.f32.gmra.mrb[0].mxu0 %v1208
        %v1354 = vpop.f32.mrb[0].mxu0
        %v1355 = vadd.f32 %v1232, %v1354
        %v1356 = vpop.f32.mrb[0].mxu0
        %1357 = vmatprep.mubr.f32.mxu0 0.0
        %1358 = vmatmul.mubr.f32.gmra.mrb[0].mxu0 %v1209
        %v1359 = vpop.f32.mrb[0].mxu0
        %v1360 = vadd.f32 %v1232, %v1359
        %v1361 = vpop.f32.mrb[0].mxu0
        %1362 = vmatprep.mubr.f32.mxu0 0.0
        %1363 = vmatmul.mubr.f32.gmra.mrb[0].mxu0 %v1210
        %v1364 = vpop.f32.mrb[0].mxu0
        %v1365 = vadd.f32 %v1232, %v1364
        %v1366 = vpop.f32.mrb[0].mxu0
        %1367 = vmatprep.mubr.f32.mxu0 0.0
        %1368 = vmatmul.mubr.f32.gmra.mrb[0].mxu0 %v1211
        %v1369 = vpop.f32.mrb[0].mxu0
        %v1370 = vadd.f32 %v1232, %v1369
        %v1371 = vpop.f32.mrb[0].mxu0
        %1372 = vmatprep.mubr.f32.mxu0 0.0
        %1373 = vmatmul.mubr.f32.gmra.mrb[0].mxu0 %v1212
        %v1374 = vpop.f32.mrb[0].mxu0
        %v1375 = vadd.f32 %v1232, %v1374
        %v1376 = vpop.f32.mrb[0].mxu0
        %1377 = vdwg.mxu0
        %v1378 = vld [vmem:[#allocation2 + $0x80] sm:$0xff]
        %v1379 = vld [vmem:[#allocation2 + $0x88] sm:$0xff]
        %v1380 = vld [vmem:[#allocation2 + $0x90] sm:$0xff]
        %v1381 = vld [vmem:[#allocation2 + $0x98] sm:$0xff]
        %v1382 = vld [vmem:[#allocation2 + $0xa0] sm:$0xff]
        %v1383 = vld [vmem:[#allocation2 + $0xa8] sm:$0xff]
        %v1384 = vld [vmem:[#allocation2 + $0xb0] sm:$0xff]
        %v1385 = vld [vmem:[#allocation2 + $0xb8] sm:$0xff]
        %v1386 = vld [vmem:[#allocation2 + $0xc0] sm:$0xff]
        %v1387 = vld [vmem:[#allocation2 + $0xc8] sm:$0xff]
        %v1388 = vld [vmem:[#allocation2 + $0xd0] sm:$0xff]
        %v1389 = vld [vmem:[#allocation2 + $0xd8] sm:$0xff]
        %v1390 = vld [vmem:[#allocation2 + $0xe0] sm:$0xff]
        %v1391 = vld [vmem:[#allocation2 + $0xe8] sm:$0xff]
        %v1392 = vld [vmem:[#allocation2 + $0xf0] sm:$0xff]
        %v1393 = vld [vmem:[#allocation2 + $0xf8] sm:$0xff]
        %v1394 = vld [vmem:[#allocation2 + $0x100] sm:$0xff]
        %v1395 = vld [vmem:[#allocation2 + $0x108] sm:$0xff]
        %v1396 = vld [vmem:[#allocation2 + $0x110] sm:$0xff]
        %v1397 = vld [vmem:[#allocation2 + $0x118] sm:$0xff]
        %v1398 = vld [vmem:[#allocation2 + $0x120] sm:$0xff]
        %v1399 = vld [vmem:[#allocation2 + $0x128] sm:$0xff]
        %v1400 = vld [vmem:[#allocation2 + $0x130] sm:$0xff]
        %v1401 = vld [vmem:[#allocation2 + $0x138] sm:$0xff]
        %v1402 = vld [vmem:[#allocation2 + $0x140] sm:$0xff]
        %v1403 = vld [vmem:[#allocation2 + $0x148] sm:$0xff]
        %v1404 = vld [vmem:[#allocation2 + $0x150] sm:$0xff]
        %v1405 = vld [vmem:[#allocation2 + $0x158] sm:$0xff]
        %v1406 = vld [vmem:[#allocation2 + $0x160] sm:$0xff]
        %v1407 = vld [vmem:[#allocation2 + $0x168] sm:$0xff]
        %v1408 = vld [vmem:[#allocation2 + $0x170] sm:$0xff]
        %v1409 = vld [vmem:[#allocation2 + $0x178] sm:$0xff]
        %v1410 = vlaneseq
        %v1411 = vshrl.u32 %v1410, 7
        %v1412 = vsub.s32 6, %v1411
        %v1413 = vrot.slane %v230, %v1412
        %1414 = vmatprep.subr.mxu0 0.0
        %1415 = vmatpush1.msra.mxu0 %v1378
        %1416 = vmatprep.subr.mxu0 0.0
        %1417 = vmatpush1.msra.mxu0 %v1379
        %1418 = vmatprep.subr.mxu0 0.0
        %1419 = vmatpush1.msra.mxu0 %v1380
        %1420 = vmatprep.subr.mxu0 0.0
        %1421 = vmatpush1.msra.mxu0 %v1381
        %1422 = vmatprep.subr.mxu0 0.0
        %1423 = vmatpush1.msra.mxu0 %v1382
        %1424 = vmatprep.subr.mxu0 0.0
        %1425 = vmatpush1.msra.mxu0 %v1383
        %1426 = vmatprep.subr.mxu0 0.0
        %1427 = vmatpush1.msra.mxu0 %v1384
        %1428 = vmatprep.subr.mxu0 0.0
        %1429 = vmatpush1.msra.mxu0 %v1385
        %1430 = vmatprep.subr.mxu0 0.0
        %1431 = vmatpush1.msra.mxu0 %v1386
        %1432 = vmatprep.subr.mxu0 0.0
        %1433 = vmatpush1.msra.mxu0 %v1387
        %1434 = vmatprep.subr.mxu0 0.0
        %1435 = vmatpush1.msra.mxu0 %v1388
        %1436 = vmatprep.subr.mxu0 0.0
        %1437 = vmatpush1.msra.mxu0 %v1389
        %1438 = vmatprep.subr.mxu0 0.0
        %1439 = vmatpush1.msra.mxu0 %v1390
        %1440 = vmatprep.subr.mxu0 0.0
        %1441 = vmatpush1.msra.mxu0 %v1391
        %1442 = vmatprep.subr.mxu0 0.0
        %1443 = vmatpush1.msra.mxu0 %v1392
        %1444 = vmatprep.subr.mxu0 0.0
        %1445 = vmatpush1.msra.mxu0 %v1393
        %1446 = vmatprep.subr.mxu0 0.0
        %1447 = vmatpush1.msra.mxu0 %v1394
        %1448 = vmatprep.subr.mxu0 0.0
        %1449 = vmatpush1.msra.mxu0 %v1395
        %1450 = vmatprep.subr.mxu0 0.0
        %1451 = vmatpush1.msra.mxu0 %v1396
        %1452 = vmatprep.subr.mxu0 0.0
        %1453 = vmatpush1.msra.mxu0 %v1397
        %1454 = vmatprep.subr.mxu0 0.0
        %1455 = vmatpush1.msra.mxu0 %v1398
        %1456 = vmatprep.subr.mxu0 0.0
        %1457 = vmatpush1.msra.mxu0 %v1399
        %1458 = vmatprep.subr.mxu0 0.0
        %1459 = vmatpush1.msra.mxu0 %v1400
        %1460 = vmatprep.subr.mxu0 0.0
        %1461 = vmatpush1.msra.mxu0 %v1401
        %1462 = vmatprep.subr.mxu0 0.0
        %1463 = vmatpush1.msra.mxu0 %v1402
        %1464 = vmatprep.subr.mxu0 0.0
        %1465 = vmatpush1.msra.mxu0 %v1403
        %1466 = vmatprep.subr.mxu0 0.0
        %1467 = vmatpush1.msra.mxu0 %v1404
        %1468 = vmatprep.subr.mxu0 0.0
        %1469 = vmatpush1.msra.mxu0 %v1405
        %1470 = vmatprep.subr.mxu0 0.0
        %1471 = vmatpush1.msra.mxu0 %v1406
        %1472 = vmatprep.subr.mxu0 0.0
        %1473 = vmatpush1.msra.mxu0 %v1407
        %1474 = vmatprep.subr.mxu0 0.0
        %1475 = vmatpush1.msra.mxu0 %v1408
        %1476 = vmatprep.subr.mxu0 0.0
        %1477 = vmatpush1.msra.mxu0 %v1409
        %1478 = vmatprep.mubr.f32.mxu0 %v713
        %1479 = vmatmul.mubr.f32.gmra.mrb[0].mxu0 %v1300
        %v1480 = vpop.f32.mrb[0].mxu0
        %v1481 = vadd.f32 %v1413, %v1480
        %v1482 = vpop.f32.mrb[0].mxu0
        %1483 = vmatprep.mubr.f32.mxu0 %v714
        %1484 = vmatmul.mubr.f32.gmra.mrb[0].mxu0 %v1305
        %v1485 = vpop.f32.mrb[0].mxu0
        %v1486 = vadd.f32 %v1413, %v1485
        %v1487 = vpop.f32.mrb[0].mxu0
        %1488 = vmatprep.mubr.f32.mxu0 %v715
        %1489 = vmatmul.mubr.f32.gmra.mrb[0].mxu0 %v1310
        %v1490 = vpop.f32.mrb[0].mxu0
        %v1491 = vadd.f32 %v1413, %v1490
        %v1492 = vpop.f32.mrb[0].mxu0
        %1493 = vmatprep.mubr.f32.mxu0 %v716
        %1494 = vmatmul.mubr.f32.gmra.mrb[0].mxu0 %v1315
        %v1495 = vpop.f32.mrb[0].mxu0
        %v1496 = vadd.f32 %v1413, %v1495
        %v1497 = vpop.f32.mrb[0].mxu0
        %1498 = vmatprep.mubr.f32.mxu0 %v717
        %1499 = vmatmul.mubr.f32.gmra.mrb[0].mxu0 %v1320
        %v1500 = vpop.f32.mrb[0].mxu0
        %v1501 = vadd.f32 %v1413, %v1500
        %v1502 = vpop.f32.mrb[0].mxu0
        %1503 = vmatprep.mubr.f32.mxu0 %v718
        %1504 = vmatmul.mubr.f32.gmra.mrb[0].mxu0 %v1325
        %v1505 = vpop.f32.mrb[0].mxu0
        %v1506 = vadd.f32 %v1413, %v1505
        %v1507 = vpop.f32.mrb[0].mxu0
        %1508 = vmatprep.mubr.f32.mxu0 %v719
        %1509 = vmatmul.mubr.f32.gmra.mrb[0].mxu0 %v1330
        %v1510 = vpop.f32.mrb[0].mxu0
        %v1511 = vadd.f32 %v1413, %v1510
        %v1512 = vpop.f32.mrb[0].mxu0
        %1513 = vmatprep.mubr.f32.mxu0 %v720
        %1514 = vmatmul.mubr.f32.gmra.mrb[0].mxu0 %v1335
        %v1515 = vpop.f32.mrb[0].mxu0
        %v1516 = vadd.f32 %v1413, %v1515
        %v1517 = vpop.f32.mrb[0].mxu0
        %1518 = vmatprep.mubr.f32.mxu0 %v721
        %1519 = vmatmul.mubr.f32.gmra.mrb[0].mxu0 %v1340
        %v1520 = vpop.f32.mrb[0].mxu0
        %v1521 = vadd.f32 %v1413, %v1520
        %v1522 = vpop.f32.mrb[0].mxu0
        %1523 = vmatprep.mubr.f32.mxu0 %v722
        %1524 = vmatmul.mubr.f32.gmra.mrb[0].mxu0 %v1345
        %v1525 = vpop.f32.mrb[0].mxu0
        %v1526 = vadd.f32 %v1413, %v1525
        %v1527 = vpop.f32.mrb[0].mxu0
        %1528 = vmatprep.mubr.f32.mxu0 %v723
        %1529 = vmatmul.mubr.f32.gmra.mrb[0].mxu0 %v1350
        %v1530 = vpop.f32.mrb[0].mxu0
        %v1531 = vadd.f32 %v1413, %v1530
        %v1532 = vpop.f32.mrb[0].mxu0
        %1533 = vmatprep.mubr.f32.mxu0 %v724
        %1534 = vmatmul.mubr.f32.gmra.mrb[0].mxu0 %v1355
        %v1535 = vpop.f32.mrb[0].mxu0
        %v1536 = vadd.f32 %v1413, %v1535
        %v1537 = vpop.f32.mrb[0].mxu0
        %1538 = vmatprep.mubr.f32.mxu0 %v725
        %1539 = vmatmul.mubr.f32.gmra.mrb[0].mxu0 %v1360
        %v1540 = vpop.f32.mrb[0].mxu0
        %v1541 = vadd.f32 %v1413, %v1540
        %v1542 = vpop.f32.mrb[0].mxu0
        %1543 = vmatprep.mubr.f32.mxu0 %v726
        %1544 = vmatmul.mubr.f32.gmra.mrb[0].mxu0 %v1365
        %v1545 = vpop.f32.mrb[0].mxu0
        %v1546 = vadd.f32 %v1413, %v1545
        %v1547 = vpop.f32.mrb[0].mxu0
        %1548 = vmatprep.mubr.f32.mxu0 %v727
        %1549 = vmatmul.mubr.f32.gmra.mrb[0].mxu0 %v1370
        %v1550 = vpop.f32.mrb[0].mxu0
        %v1551 = vadd.f32 %v1413, %v1550
        %v1552 = vpop.f32.mrb[0].mxu0
        %1553 = vmatprep.mubr.f32.mxu0 %v728
        %1554 = vmatmul.mubr.f32.gmra.mrb[0].mxu0 %v1375
        %v1555 = vpop.f32.mrb[0].mxu0
        %v1556 = vadd.f32 %v1413, %v1555
        %v1557 = vpop.f32.mrb[0].mxu0
        %1558 = vdwg.mxu0
        %vm1559 = vcmp.gt.f32.partialorder %v1481, 20.0
        %vm1560 = vcmp.gt.f32.partialorder %v1486, 20.0
        %vm1561 = vcmp.gt.f32.partialorder %v1491, 20.0
        %vm1562 = vcmp.gt.f32.partialorder %v1496, 20.0
        %vm1563 = vcmp.gt.f32.partialorder %v1501, 20.0
        %vm1564 = vcmp.gt.f32.partialorder %v1506, 20.0
        %vm1565 = vcmp.gt.f32.partialorder %v1511, 20.0
        %vm1566 = vcmp.gt.f32.partialorder %v1516, 20.0
        %vm1567 = vcmp.gt.f32.partialorder %v1521, 20.0
        %vm1568 = vcmp.gt.f32.partialorder %v1526, 20.0
        %vm1569 = vcmp.gt.f32.partialorder %v1531, 20.0
        %vm1570 = vcmp.gt.f32.partialorder %v1536, 20.0
        %vm1571 = vcmp.gt.f32.partialorder %v1541, 20.0
        %vm1572 = vcmp.gt.f32.partialorder %v1546, 20.0
        %vm1573 = vcmp.gt.f32.partialorder %v1551, 20.0
        %vm1574 = vcmp.gt.f32.partialorder %v1556, 20.0
        %v1575 = vmin.f32 %v1481, 20.0
        %v1576 = vmin.f32 %v1486, 20.0
        %v1577 = vmin.f32 %v1491, 20.0
        %v1578 = vmin.f32 %v1496, 20.0
        %v1579 = vmin.f32 %v1501, 20.0
        %v1580 = vmin.f32 %v1506, 20.0
        %v1581 = vmin.f32 %v1511, 20.0
        %v1582 = vmin.f32 %v1516, 20.0
        %v1583 = vmin.f32 %v1521, 20.0
        %v1584 = vmin.f32 %v1526, 20.0
        %v1585 = vmin.f32 %v1531, 20.0
        %v1586 = vmin.f32 %v1536, 20.0
        %v1587 = vmin.f32 %v1541, 20.0
        %v1588 = vmin.f32 %v1546, 20.0
        %v1589 = vmin.f32 %v1551, 20.0
        %v1590 = vmin.f32 %v1556, 20.0
        %v1591 = vmul.f32 %v1575, 1.442695
        %v1592 = vpow.pop %v1591
        %v1593 = vmul.f32 %v1576, 1.442695
        %v1594 = vpow.pop %v1593
        %v1595 = vmul.f32 %v1577, 1.442695
        %v1596 = vpow.pop %v1595
        %v1597 = vmul.f32 %v1578, 1.442695
        %v1598 = vpow.pop %v1597
        %v1599 = vmul.f32 %v1579, 1.442695
        %v1600 = vpow.pop %v1599
        %v1601 = vmul.f32 %v1580, 1.442695
        %v1602 = vpow.pop %v1601
        %v1603 = vmul.f32 %v1581, 1.442695
        %v1604 = vpow.pop %v1603
        %v1605 = vmul.f32 %v1582, 1.442695
        %v1606 = vpow.pop %v1605
        %v1607 = vmul.f32 %v1583, 1.442695
        %v1608 = vpow.pop %v1607
        %v1609 = vmul.f32 %v1584, 1.442695
        %v1610 = vpow.pop %v1609
        %v1611 = vmul.f32 %v1585, 1.442695
        %v1612 = vpow.pop %v1611
        %v1613 = vmul.f32 %v1586, 1.442695
        %v1614 = vpow.pop %v1613
        %v1615 = vmul.f32 %v1587, 1.442695
        %v1616 = vpow.pop %v1615
        %v1617 = vmul.f32 %v1588, 1.442695
        %v1618 = vpow.pop %v1617
        %v1619 = vmul.f32 %v1589, 1.442695
        %v1620 = vpow.pop %v1619
        %v1621 = vmul.f32 %v1590, 1.442695
        %v1622 = vpow.pop %v1621
        %v1623 = vadd.f32 %v1592, 1.0
        %v1624 = vlog2.pop %v1623
        %v1625 = vmul.f32 %v1624, 0.6931472
        %v1626 = vmul.f32 -0.5, %v1592
        %v1627 = vadd.f32 %v1626, 1.0
        %v1628 = vmul.f32 %v1627, %v1592
        %v1629 = vand.u32 2147483647, %v1592
        %vm1630 = vcmp.lt.f32.partialorder %v1629, 0.0004427343
        %v1631 = vsel %vm1630, %v1628, %v1625
        %v1632 = vadd.f32 %v1594, 1.0
        %v1633 = vlog2.pop %v1632
        %v1634 = vmul.f32 %v1633, 0.6931472
        %v1635 = vmul.f32 -0.5, %v1594
        %v1636 = vadd.f32 %v1635, 1.0
        %v1637 = vmul.f32 %v1636, %v1594
        %v1638 = vand.u32 2147483647, %v1594
        %vm1639 = vcmp.lt.f32.partialorder %v1638, 0.0004427343
        %v1640 = vsel %vm1639, %v1637, %v1634
        %v1641 = vadd.f32 %v1596, 1.0
        %v1642 = vlog2.pop %v1641
        %v1643 = vmul.f32 %v1642, 0.6931472
        %v1644 = vmul.f32 -0.5, %v1596
        %v1645 = vadd.f32 %v1644, 1.0
        %v1646 = vmul.f32 %v1645, %v1596
        %v1647 = vand.u32 2147483647, %v1596
        %vm1648 = vcmp.lt.f32.partialorder %v1647, 0.0004427343
        %v1649 = vsel %vm1648, %v1646, %v1643
        %v1650 = vadd.f32 %v1598, 1.0
        %v1651 = vlog2.pop %v1650
        %v1652 = vmul.f32 %v1651, 0.6931472
        %v1653 = vmul.f32 -0.5, %v1598
        %v1654 = vadd.f32 %v1653, 1.0
        %v1655 = vmul.f32 %v1654, %v1598
        %v1656 = vand.u32 2147483647, %v1598
        %vm1657 = vcmp.lt.f32.partialorder %v1656, 0.0004427343
        %v1658 = vsel %vm1657, %v1655, %v1652
        %v1659 = vadd.f32 %v1600, 1.0
        %v1660 = vlog2.pop %v1659
        %v1661 = vmul.f32 %v1660, 0.6931472
        %v1662 = vmul.f32 -0.5, %v1600
        %v1663 = vadd.f32 %v1662, 1.0
        %v1664 = vmul.f32 %v1663, %v1600
        %v1665 = vand.u32 2147483647, %v1600
        %vm1666 = vcmp.lt.f32.partialorder %v1665, 0.0004427343
        %v1667 = vsel %vm1666, %v1664, %v1661
        %v1668 = vadd.f32 %v1602, 1.0
        %v1669 = vlog2.pop %v1668
        %v1670 = vmul.f32 %v1669, 0.6931472
        %v1671 = vmul.f32 -0.5, %v1602
        %v1672 = vadd.f32 %v1671, 1.0
        %v1673 = vmul.f32 %v1672, %v1602
        %v1674 = vand.u32 2147483647, %v1602
        %vm1675 = vcmp.lt.f32.partialorder %v1674, 0.0004427343
        %v1676 = vsel %vm1675, %v1673, %v1670
        %v1677 = vadd.f32 %v1604, 1.0
        %v1678 = vlog2.pop %v1677
        %v1679 = vmul.f32 %v1678, 0.6931472
        %v1680 = vmul.f32 -0.5, %v1604
        %v1681 = vadd.f32 %v1680, 1.0
        %v1682 = vmul.f32 %v1681, %v1604
        %v1683 = vand.u32 2147483647, %v1604
        %vm1684 = vcmp.lt.f32.partialorder %v1683, 0.0004427343
        %v1685 = vsel %vm1684, %v1682, %v1679
        %v1686 = vadd.f32 %v1606, 1.0
        %v1687 = vlog2.pop %v1686
        %v1688 = vmul.f32 %v1687, 0.6931472
        %v1689 = vmul.f32 -0.5, %v1606
        %v1690 = vadd.f32 %v1689, 1.0
        %v1691 = vmul.f32 %v1690, %v1606
        %v1692 = vand.u32 2147483647, %v1606
        %vm1693 = vcmp.lt.f32.partialorder %v1692, 0.0004427343
        %v1694 = vsel %vm1693, %v1691, %v1688
        %v1695 = vadd.f32 %v1608, 1.0
        %v1696 = vlog2.pop %v1695
        %v1697 = vmul.f32 %v1696, 0.6931472
        %v1698 = vmul.f32 -0.5, %v1608
        %v1699 = vadd.f32 %v1698, 1.0
        %v1700 = vmul.f32 %v1699, %v1608
        %v1701 = vand.u32 2147483647, %v1608
        %vm1702 = vcmp.lt.f32.partialorder %v1701, 0.0004427343
        %v1703 = vsel %vm1702, %v1700, %v1697
        %v1704 = vadd.f32 %v1610, 1.0
        %v1705 = vlog2.pop %v1704
        %v1706 = vmul.f32 %v1705, 0.6931472
        %v1707 = vmul.f32 -0.5, %v1610
        %v1708 = vadd.f32 %v1707, 1.0
        %v1709 = vmul.f32 %v1708, %v1610
        %v1710 = vand.u32 2147483647, %v1610
        %vm1711 = vcmp.lt.f32.partialorder %v1710, 0.0004427343
        %v1712 = vsel %vm1711, %v1709, %v1706
        %v1713 = vadd.f32 %v1612, 1.0
        %v1714 = vlog2.pop %v1713
        %v1715 = vmul.f32 %v1714, 0.6931472
        %v1716 = vmul.f32 -0.5, %v1612
        %v1717 = vadd.f32 %v1716, 1.0
        %v1718 = vmul.f32 %v1717, %v1612
        %v1719 = vand.u32 2147483647, %v1612
        %vm1720 = vcmp.lt.f32.partialorder %v1719, 0.0004427343
        %v1721 = vsel %vm1720, %v1718, %v1715
        %v1722 = vadd.f32 %v1614, 1.0
        %v1723 = vlog2.pop %v1722
        %v1724 = vmul.f32 %v1723, 0.6931472
        %v1725 = vmul.f32 -0.5, %v1614
        %v1726 = vadd.f32 %v1725, 1.0
        %v1727 = vmul.f32 %v1726, %v1614
        %v1728 = vand.u32 2147483647, %v1614
        %vm1729 = vcmp.lt.f32.partialorder %v1728, 0.0004427343
        %v1730 = vsel %vm1729, %v1727, %v1724
        %v1731 = vadd.f32 %v1616, 1.0
        %v1732 = vlog2.pop %v1731
        %v1733 = vmul.f32 %v1732, 0.6931472
        %v1734 = vmul.f32 -0.5, %v1616
        %v1735 = vadd.f32 %v1734, 1.0
        %v1736 = vmul.f32 %v1735, %v1616
        %v1737 = vand.u32 2147483647, %v1616
        %vm1738 = vcmp.lt.f32.partialorder %v1737, 0.0004427343
        %v1739 = vsel %vm1738, %v1736, %v1733
        %v1740 = vadd.f32 %v1618, 1.0
        %v1741 = vlog2.pop %v1740
        %v1742 = vmul.f32 %v1741, 0.6931472
        %v1743 = vmul.f32 -0.5, %v1618
        %v1744 = vadd.f32 %v1743, 1.0
        %v1745 = vmul.f32 %v1744, %v1618
        %v1746 = vand.u32 2147483647, %v1618
        %vm1747 = vcmp.lt.f32.partialorder %v1746, 0.0004427343
        %v1748 = vsel %vm1747, %v1745, %v1742
        %v1749 = vadd.f32 %v1620, 1.0
        %v1750 = vlog2.pop %v1749
        %v1751 = vmul.f32 %v1750, 0.6931472
        %v1752 = vmul.f32 -0.5, %v1620
        %v1753 = vadd.f32 %v1752, 1.0
        %v1754 = vmul.f32 %v1753, %v1620
        %v1755 = vand.u32 2147483647, %v1620
        %vm1756 = vcmp.lt.f32.partialorder %v1755, 0.0004427343
        %v1757 = vsel %vm1756, %v1754, %v1751
        %v1758 = vadd.f32 %v1622, 1.0
        %v1759 = vlog2.pop %v1758
        %v1760 = vmul.f32 %v1759, 0.6931472
        %v1761 = vmul.f32 -0.5, %v1622
        %v1762 = vadd.f32 %v1761, 1.0
        %v1763 = vmul.f32 %v1762, %v1622
        %v1764 = vand.u32 2147483647, %v1622
        %vm1765 = vcmp.lt.f32.partialorder %v1764, 0.0004427343
        %v1766 = vsel %vm1765, %v1763, %v1760
        %v1767 = vsel %vm1559, %v1481, %v1631
        %v1768 = vsel %vm1560, %v1486, %v1640
        %v1769 = vsel %vm1561, %v1491, %v1649
        %v1770 = vsel %vm1562, %v1496, %v1658
        %v1771 = vsel %vm1563, %v1501, %v1667
        %v1772 = vsel %vm1564, %v1506, %v1676
        %v1773 = vsel %vm1565, %v1511, %v1685
        %v1774 = vsel %vm1566, %v1516, %v1694
        %v1775 = vsel %vm1567, %v1521, %v1703
        %v1776 = vsel %vm1568, %v1526, %v1712
        %v1777 = vsel %vm1569, %v1531, %v1721
        %v1778 = vsel %vm1570, %v1536, %v1730
        %v1779 = vsel %vm1571, %v1541, %v1739
        %v1780 = vsel %vm1572, %v1546, %v1748
        %v1781 = vsel %vm1573, %v1551, %v1757
        %v1782 = vsel %vm1574, %v1556, %v1766
        %v1783 = vld [vmem:[#allocation2 + $0x180] sm:$0xff]
        %v1784 = vld [vmem:[#allocation2 + $0x188] sm:$0xff]
        %v1785 = vld [vmem:[#allocation2 + $0x190] sm:$0xff]
        %v1786 = vld [vmem:[#allocation2 + $0x198] sm:$0xff]
        %v1787 = vld [vmem:[#allocation2 + $0x1a0] sm:$0xff]
        %v1788 = vld [vmem:[#allocation2 + $0x1a8] sm:$0xff]
        %v1789 = vld [vmem:[#allocation2 + $0x1b0] sm:$0xff]
        %v1790 = vld [vmem:[#allocation2 + $0x1b8] sm:$0xff]
        %v1791 = vld [vmem:[#allocation2 + $0x1c0] sm:$0xff]
        %v1792 = vld [vmem:[#allocation2 + $0x1c8] sm:$0xff]
        %v1793 = vld [vmem:[#allocation2 + $0x1d0] sm:$0xff]
        %v1794 = vld [vmem:[#allocation2 + $0x1d8] sm:$0xff]
        %v1795 = vld [vmem:[#allocation2 + $0x1e0] sm:$0xff]
        %v1796 = vld [vmem:[#allocation2 + $0x1e8] sm:$0xff]
        %v1797 = vld [vmem:[#allocation2 + $0x1f0] sm:$0xff]
        %v1798 = vld [vmem:[#allocation2 + $0x1f8] sm:$0xff]
        %v1799 = vlaneseq
        %v1800 = vshrl.u32 %v1799, 7
        %v1801 = vsub.s32 7, %v1800
        %v1802 = vrot.slane %v230, %v1801
        %1803 = vmatprep.subr.mxu0 0.0
        %1804 = vmatpush1.msra.mxu0 %v1783
        %1805 = vmatprep.subr.mxu0 0.0
        %1806 = vmatpush1.msra.mxu0 %v1784
        %1807 = vmatprep.subr.mxu0 0.0
        %1808 = vmatpush1.msra.mxu0 %v1785
        %1809 = vmatprep.subr.mxu0 0.0
        %1810 = vmatpush1.msra.mxu0 %v1786
        %1811 = vmatprep.subr.mxu0 0.0
        %1812 = vmatpush1.msra.mxu0 %v1787
        %1813 = vmatprep.subr.mxu0 0.0
        %1814 = vmatpush1.msra.mxu0 %v1788
        %1815 = vmatprep.subr.mxu0 0.0
        %1816 = vmatpush1.msra.mxu0 %v1789
        %1817 = vmatprep.subr.mxu0 0.0
        %1818 = vmatpush1.msra.mxu0 %v1790
        %1819 = vmatprep.subr.mxu0 0.0
        %1820 = vmatpush1.msra.mxu0 %v1791
        %1821 = vmatprep.subr.mxu0 0.0
        %1822 = vmatpush1.msra.mxu0 %v1792
        %1823 = vmatprep.subr.mxu0 0.0
        %1824 = vmatpush1.msra.mxu0 %v1793
        %1825 = vmatprep.subr.mxu0 0.0
        %1826 = vmatpush1.msra.mxu0 %v1794
        %1827 = vmatprep.subr.mxu0 0.0
        %1828 = vmatpush1.msra.mxu0 %v1795
        %1829 = vmatprep.subr.mxu0 0.0
        %1830 = vmatpush1.msra.mxu0 %v1796
        %1831 = vmatprep.subr.mxu0 0.0
        %1832 = vmatpush1.msra.mxu0 %v1797
        %1833 = vmatprep.subr.mxu0 0.0
        %1834 = vmatpush1.msra.mxu0 %v1798
        %1835 = vmatprep.subr.mxu0 0.0
        %1836 = vmatpush1.msra.mxu0 0.0
        %1837 = vmatprep.subr.mxu0 0.0
        %1838 = vmatpush1.msra.mxu0 0.0
        %1839 = vmatprep.subr.mxu0 0.0
        %1840 = vmatpush1.msra.mxu0 0.0
        %1841 = vmatprep.subr.mxu0 0.0
        %1842 = vmatpush1.msra.mxu0 0.0
        %1843 = vmatprep.subr.mxu0 0.0
        %1844 = vmatpush1.msra.mxu0 0.0
        %1845 = vmatprep.subr.mxu0 0.0
        %1846 = vmatpush1.msra.mxu0 0.0
        %1847 = vmatprep.subr.mxu0 0.0
        %1848 = vmatpush1.msra.mxu0 0.0
        %1849 = vmatprep.subr.mxu0 0.0
        %1850 = vmatpush1.msra.mxu0 0.0
        %1851 = vmatprep.subr.mxu0 0.0
        %1852 = vmatpush1.msra.mxu0 0.0
        %1853 = vmatprep.subr.mxu0 0.0
        %1854 = vmatpush1.msra.mxu0 0.0
        %1855 = vmatprep.subr.mxu0 0.0
        %1856 = vmatpush1.msra.mxu0 0.0
        %1857 = vmatprep.subr.mxu0 0.0
        %1858 = vmatpush1.msra.mxu0 0.0
        %1859 = vmatprep.subr.mxu0 0.0
        %1860 = vmatpush1.msra.mxu0 0.0
        %1861 = vmatprep.subr.mxu0 0.0
        %1862 = vmatpush1.msra.mxu0 0.0
        %1863 = vmatprep.subr.mxu0 0.0
        %1864 = vmatpush1.msra.mxu0 0.0
        %1865 = vmatprep.subr.mxu0 0.0
        %1866 = vmatpush1.msra.mxu0 0.0
        %1867 = vmatprep.mubr.f32.mxu0 0.0
        %1868 = vmatmul.mubr.f32.gmra.mrb[0].mxu0 %v1767
        %v1869 = vpop.f32.mrb[0].mxu0
        %v1870 = vadd.f32 %v1802, %v1869
        %v1871 = vpop.f32.mrb[0].mxu0
        %1872 = vmatprep.mubr.f32.mxu0 0.0
        %1873 = vmatmul.mubr.f32.gmra.mrb[0].mxu0 %v1768
        %v1874 = vpop.f32.mrb[0].mxu0
        %v1875 = vadd.f32 %v1802, %v1874
        %v1876 = vpop.f32.mrb[0].mxu0
        %1877 = vmatprep.mubr.f32.mxu0 0.0
        %1878 = vmatmul.mubr.f32.gmra.mrb[0].mxu0 %v1769
        %v1879 = vpop.f32.mrb[0].mxu0
        %v1880 = vadd.f32 %v1802, %v1879
        %v1881 = vpop.f32.mrb[0].mxu0
        %1882 = vmatprep.mubr.f32.mxu0 0.0
        %1883 = vmatmul.mubr.f32.gmra.mrb[0].mxu0 %v1770
        %v1884 = vpop.f32.mrb[0].mxu0
        %v1885 = vadd.f32 %v1802, %v1884
        %v1886 = vpop.f32.mrb[0].mxu0
        %1887 = vmatprep.mubr.f32.mxu0 0.0
        %1888 = vmatmul.mubr.f32.gmra.mrb[0].mxu0 %v1771
        %v1889 = vpop.f32.mrb[0].mxu0
        %v1890 = vadd.f32 %v1802, %v1889
        %v1891 = vpop.f32.mrb[0].mxu0
        %1892 = vmatprep.mubr.f32.mxu0 0.0
        %1893 = vmatmul.mubr.f32.gmra.mrb[0].mxu0 %v1772
        %v1894 = vpop.f32.mrb[0].mxu0
        %v1895 = vadd.f32 %v1802, %v1894
        %v1896 = vpop.f32.mrb[0].mxu0
        %1897 = vmatprep.mubr.f32.mxu0 0.0
        %1898 = vmatmul.mubr.f32.gmra.mrb[0].mxu0 %v1773
        %v1899 = vpop.f32.mrb[0].mxu0
        %v1900 = vadd.f32 %v1802, %v1899
        %v1901 = vpop.f32.mrb[0].mxu0
        %1902 = vmatprep.mubr.f32.mxu0 0.0
        %1903 = vmatmul.mubr.f32.gmra.mrb[0].mxu0 %v1774
        %v1904 = vpop.f32.mrb[0].mxu0
        %v1905 = vadd.f32 %v1802, %v1904
        %v1906 = vpop.f32.mrb[0].mxu0
        %1907 = vmatprep.mubr.f32.mxu0 0.0
        %1908 = vmatmul.mubr.f32.gmra.mrb[0].mxu0 %v1775
        %v1909 = vpop.f32.mrb[0].mxu0
        %v1910 = vadd.f32 %v1802, %v1909
        %v1911 = vpop.f32.mrb[0].mxu0
        %1912 = vmatprep.mubr.f32.mxu0 0.0
        %1913 = vmatmul.mubr.f32.gmra.mrb[0].mxu0 %v1776
        %v1914 = vpop.f32.mrb[0].mxu0
        %v1915 = vadd.f32 %v1802, %v1914
        %v1916 = vpop.f32.mrb[0].mxu0
        %1917 = vmatprep.mubr.f32.mxu0 0.0
        %1918 = vmatmul.mubr.f32.gmra.mrb[0].mxu0 %v1777
        %v1919 = vpop.f32.mrb[0].mxu0
        %v1920 = vadd.f32 %v1802, %v1919
        %v1921 = vpop.f32.mrb[0].mxu0
        %1922 = vmatprep.mubr.f32.mxu0 0.0
        %1923 = vmatmul.mubr.f32.gmra.mrb[0].mxu0 %v1778
        %v1924 = vpop.f32.mrb[0].mxu0
        %v1925 = vadd.f32 %v1802, %v1924
        %v1926 = vpop.f32.mrb[0].mxu0
        %1927 = vmatprep.mubr.f32.mxu0 0.0
        %1928 = vmatmul.mubr.f32.gmra.mrb[0].mxu0 %v1779
        %v1929 = vpop.f32.mrb[0].mxu0
        %v1930 = vadd.f32 %v1802, %v1929
        %v1931 = vpop.f32.mrb[0].mxu0
        %1932 = vmatprep.mubr.f32.mxu0 0.0
        %1933 = vmatmul.mubr.f32.gmra.mrb[0].mxu0 %v1780
        %v1934 = vpop.f32.mrb[0].mxu0
        %v1935 = vadd.f32 %v1802, %v1934
        %v1936 = vpop.f32.mrb[0].mxu0
        %1937 = vmatprep.mubr.f32.mxu0 0.0
        %1938 = vmatmul.mubr.f32.gmra.mrb[0].mxu0 %v1781
        %v1939 = vpop.f32.mrb[0].mxu0
        %v1940 = vadd.f32 %v1802, %v1939
        %v1941 = vpop.f32.mrb[0].mxu0
        %1942 = vmatprep.mubr.f32.mxu0 0.0
        %1943 = vmatmul.mubr.f32.gmra.mrb[0].mxu0 %v1782
        %v1944 = vpop.f32.mrb[0].mxu0
        %v1945 = vadd.f32 %v1802, %v1944
        %v1946 = vpop.f32.mrb[0].mxu0
        %1947 = vdwg.mxu0
        %1948 = vst [vmem:[%s206] sm:$0xff] %v1870
        %1949 = vst [vmem:[%s206 + $0x8] sm:$0xff] %v1875
        %1950 = vst [vmem:[%s206 + $0x10] sm:$0xff] %v1880
        %1951 = vst [vmem:[%s206 + $0x18] sm:$0xff] %v1885
        %1952 = vst [vmem:[%s206 + $0x20] sm:$0xff] %v1890
        %1953 = vst [vmem:[%s206 + $0x28] sm:$0xff] %v1895
        %1954 = vst [vmem:[%s206 + $0x30] sm:$0xff] %v1900
        %1955 = vst [vmem:[%s206 + $0x38] sm:$0xff] %v1905
        %1956 = vst [vmem:[%s206 + $0x40] sm:$0xff] %v1910
        %1957 = vst [vmem:[%s206 + $0x48] sm:$0xff] %v1915
        %1958 = vst [vmem:[%s206 + $0x50] sm:$0xff] %v1920
        %1959 = vst [vmem:[%s206 + $0x58] sm:$0xff] %v1925
        %1960 = vst [vmem:[%s206 + $0x60] sm:$0xff] %v1930
        %1961 = vst [vmem:[%s206 + $0x68] sm:$0xff] %v1935
        %1962 = vst [vmem:[%s206 + $0x70] sm:$0xff] %v1940
        %1963 = vst [vmem:[%s206 + $0x78] sm:$0xff] %v1945
        %s1964 = sand.u32 %s116, 1
        %s1965 = scalar_lea.sflag [#allocation4], %s1964
        %s1966 = sand.u32 %s116, 1
        %s1967 = smul.addr %s1966, 128
        %s1968 = scalar_lea.vmem [#allocation5], %s1967
        // Predicated region
        $region41: #{tpu_custom_call.1} parent=35 // pred_check
          %p1969 = pneg %p126
        $region42: #{tpu_custom_call.1} parent=35 // pred_check_branch
          %1971 = sbr.rel (%p1969) target = $region44
        $region43: #{tpu_custom_call.1} parent=35 // pred_region
          %s1972 = smul.u32 16, %s19
          %s1974 = ssub.s32 2048, 2048
          %1975 = vsyncadd %s1965, %s1974
          %s1976 = smul.addr %s1972, 128
          %s1977 = scalar_lea.hbm %s4, %s1976
          %s1978 = sshll.u32 %s1968, 4
          %s1979 = int_to_ptr.vmem [resolvable:$true] %s1978
          %1984 = dma.vmem_to_hbm [thread:$0]  %s1979, 2048, %s1977, %s1965, 128, 128, 8
        $region44: #{tpu_custom_call.1} parent=35 // pred_fallthru
          _
      $region36: #{tpu_custom_call.1} parent=5 // pred_fallthru
        _
      %p1985 = scmp.le.s32.totalorder 2, %s14
      // Predicated region
      $region45: #{tpu_custom_call.1} parent=5 // pred_check
        %p1986 = pneg %p1985
      $region46: #{tpu_custom_call.1} parent=5 // pred_check_branch
        %1988 = sbr.rel (%p1986) target = $region48
      $region47: #{tpu_custom_call.1} parent=5 // pred_region
        %s1989 = ssub.s32 %s14, 2
        // Predicated region
        $region49: #{tpu_custom_call.1} parent=47 // pred_check
          %p1990 = pneg %p132
        $region50: #{tpu_custom_call.1} parent=47 // pred_check_branch
          %1992 = sbr.rel (%p1990) target = $region52
        $region51: #{tpu_custom_call.1} parent=47 // pred_region
          %s1993 = sand.u32 %s117, 1
          %s1994 = scalar_lea.sflag [#allocation4], %s1993
          %s1995 = sand.u32 %s117, 1
          %s1996 = smul.addr %s1995, 128
          %s1997 = scalar_lea.vmem [#allocation5], %s1996
          %1998 = dma.done %s1994, 2048
        $region52: #{tpu_custom_call.1} parent=47 // pred_fallthru
          _
      $region48: #{tpu_custom_call.1} parent=5 // pred_fallthru
        _
    $region6: #{tpu_custom_call.1} parent=1 // loop_footer
      %s18 = sadd.s32 1, %s14
    $region7: #{tpu_custom_call.1} parent=1 // loop_footer_branch
      %13 = sbr.rel target = $region3
    $region8: #{tpu_custom_call.1} parent=1 // loop_exit
      _
    %1999 = vsyncpa [#allocation3], 1
    %s2000 = scalar_lea.sflag [#allocation3], 1
    %2001 = vsyncpa %s2000, 1
    %2002 = vsyncpa [#allocation4], 1
    %s2003 = scalar_lea.sflag [#allocation4], 1
    %2004 = vsyncpa %s2003, 1

</llo_original>
